<compile_context>
chip_gen: v7x
topology: tpu7x:2x2x1
jax: 0.10.0
libtpu: 0.0.40
codegen_flags: <defaults>
</compile_context>

<pallas_src>
import functools
import math

import jax
import jax.numpy as jnp
from jax.experimental import pallas as pl
from jax.experimental.pallas import tpu as pltpu


# ---------------------------------------------------------------------------
# Kernel 1: 3x3 conv (stride 1, pad 1, no bias) + per-tile BN partial sums.
# ---------------------------------------------------------------------------
def _conv3x3_stats_kernel(x_ref, wt_ref, y_ref, stats_ref, *, kh, kw, tile_h, out_w):
    # x_ref block: (1, tile_h + kh - 1, W + kw - 1, Cin) bf16 (includes the halo).
    x = x_ref[0]                                   # keep bf16: assemble im2col in bf16
    cin = x.shape[-1]
    rows = tile_h * out_w
    pad_rows = (tile_h + kh - 1) * out_w

    # Folded im2col patch matrix (rows, kh*kw*cin) from static shifted views:
    #   kw width-shifted views flattened to 2-D, then kh aligned row-range slices.
    cols = []
    for iw in range(kw):
        cols.append(x[:, iw:iw + out_w, :].reshape(pad_rows, cin))
    pieces = []
    for ih in range(kh):
        for iw in range(kw):
            pieces.append(cols[iw][ih * out_w: ih * out_w + rows, :])
    patches = jnp.concatenate(pieces, axis=-1)     # (rows, kh*kw*cin) bf16

    # y^T = Wfold (C1, K) . patches^T (K, rows): one MXU contraction, bf16 in,
    # f32 accumulate.  Channel-major output keeps the big pixel dim on lanes.
    yt = jax.lax.dot_general(
        wt_ref[...], patches,
        dimension_numbers=(((1,), (1,)), ((), ())),
        preferred_element_type=jnp.float32)        # (C1, rows) f32

    # BN partial statistics from the f32 accumulator (before the bf16 cast),
    # channels on lanes: (1, 2, C1) block -> no 2-wide masked lane stores.
    s = jnp.sum(yt, axis=1)[None, :]               # (1, C1)
    sq = jnp.sum(yt * yt, axis=1)[None, :]         # (1, C1)
    stats_ref[0] = jnp.concatenate([s, sq], axis=0)

    # bf16 intermediate to HBM: halves the largest HBM round-trip of the head.
    y_ref[...] = yt.astype(jnp.bfloat16)


# ---------------------------------------------------------------------------
# Kernel 2: BN affine + ReLU + 1x1 conv (+bias) + separable bilinear upsample.
# ---------------------------------------------------------------------------
def _bn_relu_conv1x1_upsample_kernel(y_ref, scale_ref, shift_ref, w1_ref, b1_ref,
                                     mh_ref, mwt_ref, o_ref, *, h, w):
    c2 = w1_ref.shape[0]
    yt = y_ref[...].astype(jnp.float32)                               # (C1, H*W)
    zt = jnp.maximum(yt * scale_ref[...] + shift_ref[...], 0.0)       # BN + ReLU, f32
    u = jnp.dot(w1_ref[...], zt.astype(jnp.bfloat16),
                preferred_element_type=jnp.float32) + b1_ref[...]     # (C2, H*W)

    # Separable bilinear align_corners=True upsample: o = Mh @ u_c @ Mw^T per channel.
    # Interp matrices are tiny after separation; kept in f32 for exactness.
    u3 = u.reshape(c2, h, w)
    mh = mh_ref[...]                                                  # (Ho, H)
    mwt = mwt_ref[...]                                                # (W, Wo)
    for c in range(c2):                                               # static unroll
        t = jnp.dot(mh, u3[c], preferred_element_type=jnp.float32)    # (Ho, W)
        o_ref[0, c] = jnp.dot(t, mwt, preferred_element_type=jnp.float32)  # (Ho, Wo)


# ---------------------------------------------------------------------------
# Wrapper
# ---------------------------------------------------------------------------
def _interp_matrix(n_in, n_out, dtype=jnp.float32):
    """1-D bilinear interpolation matrix, PyTorch align_corners=True semantics."""
    if n_out == n_in:
        return jnp.eye(n_in, dtype=dtype)
    pos = jnp.arange(n_out, dtype=jnp.float32) * (n_in - 1) / (n_out - 1)
    i0 = jnp.clip(jnp.floor(pos).astype(jnp.int32), 0, n_in - 2)
    frac = pos - i0.astype(jnp.float32)
    cols = jnp.arange(n_in, dtype=jnp.int32)
    oh0 = (i0[:, None] == cols[None, :]).astype(dtype)
    oh1 = ((i0 + 1)[:, None] == cols[None, :]).astype(dtype)
    return (1.0 - frac)[:, None] * oh0 + frac[:, None] * oh1


def _default_vmem_limit():
    # ~96 MiB on v5e/v6e (128 MiB physical), ~48 MiB on v7x (64 MiB physical).
    try:
        cap = int(pltpu.get_tpu_info().vmem_capacity_bytes)
    except Exception:
        cap = 64 * 1024 * 1024
    return max(32 * 1024 * 1024, min(cap * 3 // 4, 100 * 1024 * 1024))


def bisenet_head(x_nchw, w3, gamma, beta, w1, b1, *, scale, bn_eps=1e-5, tile_h=None):
    """BiSeNetHead forward.  w3: (C1, Cin, 3, 3); w1: (C2, C1, 1, 1); b1: (C2,)."""
    n, cin, h, w = x_nchw.shape
    c1, cin_w, kh, kw = w3.shape
    assert cin == cin_w and kh == 3 and kw == 3
    c2 = w1.shape[0]
    pad = 1

    # PyTorch: output spatial size = floor(in * scale_factor).
    h_out = int(math.floor(h * float(scale))) if scale > 1 else h
    w_out = int(math.floor(w * float(scale))) if scale > 1 else w

    vmem_limit = _default_vmem_limit()

    def _tile_bytes(th):
        rows = th * w
        in_blk = 2 * (th + kh - 1) * (w + kw - 1) * cin * 2       # bf16, double-buffered
        im2col = 2 * rows * kh * kw * cin * 2                     # patches + temporaries
        acc = 2 * c1 * rows * 4                                   # f32 accumulator + temps
        out_blk = 2 * c1 * rows * 2                               # bf16 output, double-buffered
        return in_blk + im2col + acc + out_blk

    if tile_h is None:
        budget = max(vmem_limit // 2, 8 << 20)
        tile_h = h
        for cand in range(h, 0, -1):
            if h % cand == 0 and (cand * w) % 128 == 0 and _tile_bytes(cand) <= budget:
                tile_h = cand
                break
    assert h % tile_h == 0, "tile_h must divide H"
    r_tile = tile_h * w
    # TODO(synk): pad the pixel dimension when W*tile_h or H*W is not a multiple of 128
    # (lane alignment of the channel-major blocks).
    assert r_tile % 128 == 0 and (h * w) % 128 == 0

    # NCHW -> NHWC in bf16 (halves staging traffic), spatial zero-pad by 1 (conv pad=1).
    x = jnp.transpose(x_nchw, (0, 2, 3, 1)).astype(jnp.bfloat16)
    xp = jnp.pad(x, ((0, 0), (pad, pad), (pad, pad), (0, 0)))

    t_per_img = h // tile_h
    if t_per_img == 1:
        # Per-image tiles: no halo duplication, no restage — padded array used directly.
        x_tiles = xp
    else:
        # Row tiles with a 2-row halo.
        # TODO(synk): replace this restage with memory_space=pl.ANY + in-kernel
        # make_async_copy double-buffering to avoid a second HBM copy of the input.
        tiles = [xp[:, t * tile_h: t * tile_h + tile_h + kh - 1] for t in range(t_per_img)]
        x_tiles = jnp.stack(tiles, axis=1).reshape(
            n * t_per_img, tile_h + kh - 1, w + kw - 1, cin)

    # Folded conv weight, pre-laid-out for the (C1, K) x (rows, K) contraction:
    # wt[c, (ih*KW+iw)*Cin + ci] = w3[c, ci, ih, iw] (PyTorch conv = cross-correlation).
    wt = jnp.transpose(w3, (0, 2, 3, 1)).reshape(c1, kh * kw * cin).astype(jnp.bfloat16)

    num_tiles = n * t_per_img  # note: keep even where possible so v7x's 2 TCs both work
    k1 = functools.partial(_conv3x3_stats_kernel, kh=kh, kw=kw, tile_h=tile_h, out_w=w)
    yt_all, stats = pl.pallas_call(
        k1,
        grid=(num_tiles,),
        in_specs=[
            pl.BlockSpec((1, tile_h + kh - 1, w + kw - 1, cin), lambda t: (t, 0, 0, 0)),
            pl.BlockSpec((c1, kh * kw * cin), lambda t: (0, 0)),
        ],
        out_specs=[
            pl.BlockSpec((c1, r_tile), lambda t: (0, t)),
            pl.BlockSpec((1, 2, c1), lambda t: (t, 0, 0)),
        ],
        out_shape=(
            jax.ShapeDtypeStruct((c1, n * h * w), jnp.bfloat16),
            jax.ShapeDtypeStruct((num_tiles, 2, c1), jnp.float32),
        ),
        compiler_params=pltpu.CompilerParams(
            dimension_semantics=("parallel",),
            vmem_limit_bytes=vmem_limit,
        ),
    )(x_tiles, wt)

    # Cross-tile BatchNorm reduction (tiny) + folding into one per-channel FMA.
    # TODO(synk): E[x^2]-mean^2 is cancellation-prone for very large N*H*W; switch to
    # Chan/Welford-style (count, mean, M2) partials if that becomes a problem.
    cnt = float(n * h * w)
    ssum = jnp.sum(stats, axis=0)                       # (2, C1)
    mean = ssum[0] / cnt
    var = jnp.maximum(ssum[1] / cnt - mean * mean, 0.0)
    inv = jax.lax.rsqrt(var + bn_eps)
    scale_c = (gamma * inv).reshape(c1, 1).astype(jnp.float32)
    shift_c = (beta - mean * gamma * inv).reshape(c1, 1).astype(jnp.float32)

    # Separable interpolation matrices (KB-sized): rows (Ho, H) and columns (W, Wo).
    mh = _interp_matrix(h, h_out).astype(jnp.float32)
    mwt = _interp_matrix(w, w_out).T.astype(jnp.float32)

    w1m = w1.reshape(c2, c1).astype(jnp.bfloat16)
    b1m = b1.reshape(c2, 1).astype(jnp.float32)

    k2 = functools.partial(_bn_relu_conv1x1_upsample_kernel, h=h, w=w)
    out = pl.pallas_call(
        k2,
        grid=(n,),
        in_specs=[
            pl.BlockSpec((c1, h * w), lambda i: (0, i)),
            pl.BlockSpec((c1, 1), lambda i: (0, 0)),
            pl.BlockSpec((c1, 1), lambda i: (0, 0)),
            pl.BlockSpec((c2, c1), lambda i: (0, 0)),
            pl.BlockSpec((c2, 1), lambda i: (0, 0)),
            pl.BlockSpec((h_out, h), lambda i: (0, 0)),
            pl.BlockSpec((w, w_out), lambda i: (0, 0)),
        ],
        out_specs=pl.BlockSpec((1, c2, h_out, w_out), lambda i: (i, 0, 0, 0)),
        out_shape=jax.ShapeDtypeStruct((n, c2, h_out, w_out), jnp.float32),
        compiler_params=pltpu.CompilerParams(
            dimension_semantics=("parallel",),
            vmem_limit_bytes=vmem_limit,
        ),
    )(yt_all, scale_c, shift_c, w1m, b1m, mh, mwt)

    return out  # already NCHW


# ---------------------------------------------------------------------------
# Pure-JAX reference for validation.
#   match_kernel_precision=True mirrors the kernel's bf16 MXU operands exactly;
#   False is true fp32 module semantics (PyTorch parity, checked loosely).
# ---------------------------------------------------------------------------
def _reference(x_nchw, w3, gamma, beta, w1, b1, *, scale, bn_eps,
               match_kernel_precision):
    n, cin, h, w = x_nchw.shape
    c1 = w3.shape[0]
    c2 = w1.shape[0]
    if match_kernel_precision:
        xc = x_nchw.astype(jnp.bfloat16).astype(jnp.float32)
        wc = w3.astype(jnp.bfloat16).astype(jnp.float32)
    else:
        xc, wc = x_nchw, w3
    x_nhwc = jnp.transpose(xc, (0, 2, 3, 1))
    w_hwio = jnp.transpose(wc, (2, 3, 1, 0))
    y = jax.lax.conv_general_dilated(
        x_nhwc, w_hwio, window_strides=(1, 1), padding=[(1, 1), (1, 1)],
        dimension_numbers=("NHWC", "HWIO", "NHWC"))
    mean = jnp.mean(y, axis=(0, 1, 2))
    var = jnp.mean((y - mean) ** 2, axis=(0, 1, 2))
    if match_kernel_precision:
        y = y.astype(jnp.bfloat16).astype(jnp.float32)
    z = jnp.maximum((y - mean) * jax.lax.rsqrt(var + bn_eps) * gamma + beta, 0.0)
    w1m = w1.reshape(c2, c1)
    if match_kernel_precision:
        z = z.astype(jnp.bfloat16).astype(jnp.float32)
        w1m = w1m.astype(jnp.bfloat16).astype(jnp.float32)
    u = jnp.einsum("nhwc,oc->nhwo", z, w1m) + b1
    if scale > 1:
        h_out = int(math.floor(h * float(scale)))
        w_out = int(math.floor(w * float(scale)))
        mh = _interp_matrix(h, h_out)
        mw = _interp_matrix(w, w_out)
        t = jnp.einsum("oh,nhwc->nowc", mh, u)
        out = jnp.einsum("pw,nowc->ncop", mw, t)
    else:
        out = jnp.transpose(u, (0, 3, 1, 2))
    return out


if __name__ == "__main__":
    # BiSeNetHead(in_planes=4, out_planes=8, scale=2, is_aux=False):
    #   conv_3x3: Conv2d(4, 64, 3, stride=1, pad=1, bias=False) + BN(train stats) + ReLU
    #   conv_1x1: Conv2d(64, 8, 1) with bias
    #   bilinear x2 upsample, align_corners=True
    in_planes, mid_planes, out_planes, scale = 4, 64, 8, 2
    n, h, w = 2, 16, 16
    bn_eps = 1e-5

    key = jax.random.PRNGKey(0)
    kx, kw3, kg, kb, kw1, kb1 = jax.random.split(key, 6)
    x = jax.random.normal(kx, (n, in_planes, h, w), dtype=jnp.float32)
    w3 = 0.2 * jax.random.normal(kw3, (mid_planes, in_planes, 3, 3), dtype=jnp.float32)
    gamma = 1.0 + 0.1 * jax.random.normal(kg, (mid_planes,), dtype=jnp.float32)
    beta = 0.1 * jax.random.normal(kb, (mid_planes,), dtype=jnp.float32)
    w1 = 0.2 * jax.random.normal(kw1, (out_planes, mid_planes, 1, 1), dtype=jnp.float32)
    b1 = 0.1 * jax.random.normal(kb1, (out_planes,), dtype=jnp.float32)

    # Default path: tile_h == H (no halo restage), grid = N images.
    out = bisenet_head(x, w3, gamma, beta, w1, b1, scale=scale, bn_eps=bn_eps)
    out = jax.block_until_ready(out)
    assert out.shape == (n, out_planes, scale * h, scale * w), out.shape

    # Row-tiled path (tile_h < H) must agree with the per-image path.
    out_tiled = jax.block_until_ready(
        bisenet_head(x, w3, gamma, beta, w1, b1, scale=scale, bn_eps=bn_eps, tile_h=8))
    tile_err = float(jnp.max(jnp.abs(out - out_tiled)))
    assert jnp.allclose(out, out_tiled, atol=1e-3, rtol=1e-3), tile_err

    # Tight check against the precision-matched reference (validates kernel logic).
    ref_m = _reference(x, w3, gamma, beta, w1, b1, scale=scale, bn_eps=bn_eps,
                       match_kernel_precision=True)
    err_m = float(jnp.max(jnp.abs(out - ref_m)))
    assert jnp.allclose(out, ref_m, atol=2e-3, rtol=2e-3), err_m

    # Loose check against true fp32 module semantics (bf16 MXU operands => ~1e-2 abs).
    ref_f = _reference(x, w3, gamma, beta, w1, b1, scale=scale, bn_eps=bn_eps,
                       match_kernel_precision=False)
    err_f = float(jnp.max(jnp.abs(out - ref_f)))
    assert err_f < 0.1, err_f

    print("KERNEL_OK")
</pallas_src>

<mosaic_0001>
module attributes {stable_mosaic.version = 11 : i64} {
  func.func @_conv3x3_stats_kernel(%arg0: i32, %arg1: memref<1x18x18x4xbf16, #tpu.memory_space<vmem>>, %arg2: memref<64x36xbf16, #tpu.memory_space<vmem>>, %arg3: memref<64x256xbf16, #tpu.memory_space<vmem>>, %arg4: memref<1x2x64xf32, #tpu.memory_space<vmem>>) attributes {dimension_semantics = [#tpu.dimension_semantics<parallel>], iteration_bounds = array<i64: 2>, scalar_prefetch = 0 : i64, scratch_operands = 0 : i64, tpu.core_type = #tpu.core_type<tc>, window_params = [{transform_indices = @transform_0, window_bounds = array<i64: 1, 18, 18, 4>}, {pipeline_mode = #tpu.pipeline_mode<synchronous>, transform_indices = @transform_1, window_bounds = array<i64: 64, 36>}, {transform_indices = @transform_2, window_bounds = array<i64: 64, 256>}, {transform_indices = @transform_3, window_bounds = array<i64: 1, 2, 64>}]} {
    %c0 = arith.constant 0 : index
    %c0_0 = arith.constant 0 : index
    %c0_1 = arith.constant 0 : index
    %c0_2 = arith.constant 0 : index
    %0 = vector.load %arg1[%c0, %c0_0, %c0_1, %c0_2] : memref<1x18x18x4xbf16, #tpu.memory_space<vmem>>, vector<1x18x18x4xbf16>
    %1 = vector.shape_cast %0 : vector<1x18x18x4xbf16> to vector<18x18x4xbf16>
    %2 = vector.extract_strided_slice %1 {offsets = [0, 0, 0], sizes = [18, 16, 4], strides = [1, 1, 1]} : vector<18x18x4xbf16> to vector<18x16x4xbf16>
    %3 = vector.shape_cast %2 : vector<18x16x4xbf16> to vector<288x4xbf16>
    %4 = vector.extract_strided_slice %1 {offsets = [0, 1, 0], sizes = [18, 16, 4], strides = [1, 1, 1]} : vector<18x18x4xbf16> to vector<18x16x4xbf16>
    %5 = vector.shape_cast %4 : vector<18x16x4xbf16> to vector<288x4xbf16>
    %6 = vector.extract_strided_slice %1 {offsets = [0, 2, 0], sizes = [18, 16, 4], strides = [1, 1, 1]} : vector<18x18x4xbf16> to vector<18x16x4xbf16>
    %7 = vector.shape_cast %6 : vector<18x16x4xbf16> to vector<288x4xbf16>
    %8 = vector.extract_strided_slice %3 {offsets = [0, 0], sizes = [256, 4], strides = [1, 1]} : vector<288x4xbf16> to vector<256x4xbf16>
    %9 = vector.extract_strided_slice %5 {offsets = [0, 0], sizes = [256, 4], strides = [1, 1]} : vector<288x4xbf16> to vector<256x4xbf16>
    %10 = vector.extract_strided_slice %7 {offsets = [0, 0], sizes = [256, 4], strides = [1, 1]} : vector<288x4xbf16> to vector<256x4xbf16>
    %11 = vector.extract_strided_slice %3 {offsets = [16, 0], sizes = [256, 4], strides = [1, 1]} : vector<288x4xbf16> to vector<256x4xbf16>
    %12 = vector.extract_strided_slice %5 {offsets = [16, 0], sizes = [256, 4], strides = [1, 1]} : vector<288x4xbf16> to vector<256x4xbf16>
    %13 = vector.extract_strided_slice %7 {offsets = [16, 0], sizes = [256, 4], strides = [1, 1]} : vector<288x4xbf16> to vector<256x4xbf16>
    %14 = vector.extract_strided_slice %3 {offsets = [32, 0], sizes = [256, 4], strides = [1, 1]} : vector<288x4xbf16> to vector<256x4xbf16>
    %15 = vector.extract_strided_slice %5 {offsets = [32, 0], sizes = [256, 4], strides = [1, 1]} : vector<288x4xbf16> to vector<256x4xbf16>
    %16 = vector.extract_strided_slice %7 {offsets = [32, 0], sizes = [256, 4], strides = [1, 1]} : vector<288x4xbf16> to vector<256x4xbf16>
    %17 = tpu.concatenate %8, %9, %10, %11, %12, %13, %14, %15, %16 in 1 : vector<256x4xbf16>, vector<256x4xbf16>, vector<256x4xbf16>, vector<256x4xbf16>, vector<256x4xbf16>, vector<256x4xbf16>, vector<256x4xbf16>, vector<256x4xbf16>, vector<256x4xbf16> -> vector<256x36xbf16>
    %c0_3 = arith.constant 0 : index
    %c0_4 = arith.constant 0 : index
    %18 = vector.load %arg2[%c0_3, %c0_4] : memref<64x36xbf16, #tpu.memory_space<vmem>>, vector<64x36xbf16>
    %cst = arith.constant dense<0.000000e+00> : vector<64x256xf32>
    %19 = tpu.matmul %18, %17, %cst {dimension_numbers = #tpu.dot_dimension_numbers<[1], [1], [0], [0], [0, 0, 1, 0], [], []>} : vector<64x36xbf16>, vector<256x36xbf16>, vector<64x256xf32> -> vector<64x256xf32>
    %cst_5 = arith.constant dense<0.000000e+00> : vector<64xf32>
    %20 = vector.multi_reduction <add>, %19, %cst_5 [1] : vector<64x256xf32> to vector<64xf32>
    %21 = vector.shape_cast %20 : vector<64xf32> to vector<1x64xf32>
    %22 = arith.mulf %19, %19 : vector<64x256xf32>
    %cst_6 = arith.constant dense<0.000000e+00> : vector<64xf32>
    %23 = vector.multi_reduction <add>, %22, %cst_6 [1] : vector<64x256xf32> to vector<64xf32>
    %24 = vector.shape_cast %23 : vector<64xf32> to vector<1x64xf32>
    %25 = tpu.concatenate %21, %24 in 0 : vector<1x64xf32>, vector<1x64xf32> -> vector<2x64xf32>
    %c0_7 = arith.constant 0 : index
    %c0_8 = arith.constant 0 : index
    %c0_9 = arith.constant 0 : index
    %26 = vector.load %arg4[%c0_7, %c0_8, %c0_9] : memref<1x2x64xf32, #tpu.memory_space<vmem>>, vector<1x2x64xf32>
    %27 = vector.shape_cast %26 : vector<1x2x64xf32> to vector<2x64xf32>
    %28 = vector.shape_cast %25 : vector<2x64xf32> to vector<1x2x64xf32>
    tpu.vector_store %arg4[%c0_7, %c0_8, %c0_9], %28 {strides = array<i32>} : memref<1x2x64xf32, #tpu.memory_space<vmem>>, vector<1x2x64xf32>,
    %29 = arith.truncf %19 : vector<64x256xf32> to vector<64x256xbf16>
    %c0_10 = arith.constant 0 : index
    %c0_11 = arith.constant 0 : index
    %30 = vector.load %arg3[%c0_10, %c0_11] : memref<64x256xbf16, #tpu.memory_space<vmem>>, vector<64x256xbf16>
    tpu.vector_store %arg3[%c0_10, %c0_11], %29 {strides = array<i32>} : memref<64x256xbf16, #tpu.memory_space<vmem>>, vector<64x256xbf16>,
    return
  }
  func.func @transform_0(%arg0: i32) -> (i32, i32, i32, i32) {
    %c0_i32 = arith.constant 0 : i32
    %c0_i32_0 = arith.constant 0 : i32
    %c0_i32_1 = arith.constant 0 : i32
    %c0_i32_2 = arith.constant 0 : i32
    return %arg0, %c0_i32, %c0_i32_0, %c0_i32_1 : i32, i32, i32, i32
  }
  func.func @transform_1(%arg0: i32) -> (i32, i32) {
    %c0_i32 = arith.constant 0 : i32
    %c0_i32_0 = arith.constant 0 : i32
    %c0_i32_1 = arith.constant 0 : i32
    return %c0_i32, %c0_i32_0 : i32, i32
  }
  func.func @transform_2(%arg0: i32) -> (i32, i32) {
    %c0_i32 = arith.constant 0 : i32
    %c0_i32_0 = arith.constant 0 : i32
    return %c0_i32, %arg0 : i32, i32
  }
  func.func @transform_3(%arg0: i32) -> (i32, i32, i32) {
    %c0_i32 = arith.constant 0 : i32
    %c0_i32_0 = arith.constant 0 : i32
    %c0_i32_1 = arith.constant 0 : i32
    return %arg0, %c0_i32, %c0_i32_0 : i32, i32, i32
  }
}

</mosaic_0001>

<llo_original>
// kernel: tpu_custom_call.1
$region0: #{tpu_custom_call.1}
  #allocation0 [shape = 'u32[]', space=smem, size = 0x4, offset = 0x4, fixed_abs, tag = 'smem constant byte address 0x4 - core index']
  #allocation1 [shape = 'u32[144,128]{1,0:T(1,128)}', space=vmem, size = 0x12000, scoped, tag = 'internal scratch']
  %s0 = inlined_call_operand.vmem [shape: bf16[2,18,18,4], index: 0, kind: input, shape index: {}]
  %s1 = inlined_call_operand.vmem [shape: bf16[64,36], index: 1, kind: input, shape index: {}]
  %s2 = inlined_call_operand.hbm [shape: bf16[64,512], index: 2, kind: output, shape index: {0}]
  %s3 = inlined_call_operand.hbm [shape: f32[2,2,64], index: 3, kind: output, shape index: {1}]
  %4 = xla_tuple %s2, %s3
  %s5 = sld [smem:[#allocation0]]
  $region49: #{tpu_custom_call.1} parent=0
    _
  %s7 = ssub.s32 1, %s5
  %s8 = scalar_select 0, %s7, %s5
  $region1: #{tpu_custom_call.1} parent=0
    #allocation2 [shape = 'u8[65536]{0}', space=vmem, size = 0x10000, scoped, tag = 'output window, operand 0']
    #allocation3 [shape = 's32[2]{0}', space=sflag, size = 0x8, scoped, tag = 'scoped memory for tpu_custom_call.1']
    #allocation4 [shape = 'u8[2048]{0}', space=vmem, size = 0x800, scoped, tag = 'output window, operand 1']
    #allocation5 [shape = 's32[2]{0}', space=sflag, size = 0x8, scoped, tag = 'scoped memory for tpu_custom_call.1']
    %9 = vsyncpa [#allocation3], 0
    %s10 = scalar_lea.sflag [#allocation3], 1
    %11 = vsyncpa %s10, 0
    %12 = vsyncpa [#allocation5], 0
    %s13 = scalar_lea.sflag [#allocation5], 1
    %14 = vsyncpa %s13, 0
    loop: start=0, step=1, limit=4
    $region2: #{tpu_custom_call.1} parent=1 // loop_pre_header
      _
    $region3: #{tpu_custom_call.1} parent=1 // loop_header
      %s16 = sphi 0, %s20
      %p17 = scmp.ge.s32.totalorder %s16, 4
      %s26 = sphi 0, %s28
      %s29 = sphi 0, %s26
      %s30 = sphi 0, %s29
      %s46 = sphi 0, %s30
      %s50 = sphi 0, %s50
      %s52 = sphi 0, %s50
      %s53 = sphi 0, %s52
      %s67 = sphi 0, %s53
      %s73 = sphi 0, %s75
      %s76 = sphi 0, %s73
      %s77 = sphi 0, %s76
      %s93 = sphi 0, %s77
      %s99 = sphi 0, %s101
      %s102 = sphi 0, %s99
      %s103 = sphi 0, %s102
      %s119 = sphi 0, %s103
    $region4: #{tpu_custom_call.1} parent=1 // loop_header_branch
      %19 = sbr.rel (%p17) target = $region8
    $region5: #{tpu_custom_call.1} parent=1 // loop_body
      %s21 = ssub.s32 %s16, 1
      %s22 = ssub.s32 %s16, 2
      %s23 = sadd.s32 %s16, 1
      %s24 = ssub.s32 %s16, %s23
      %p25 = scmp.eq.s32.totalorder %s24, 0
      %s27 = sadd.s32 %s26, 1
      %s28 = scalar_select %p25, %s26, %s27
      %p31 = pneg %p25
      %p32 = scmp.eq.s32.totalorder %s16, 1
      %p33 = por %p31, %p32
      %p34 = scmp.ne.s32.totalorder %s26, %s29
      %p35 = scmp.eq.s32.totalorder %s16, 0
      %p36 = por %p34, %p35
      %p37 = scmp.ne.s32.totalorder %s26, %s29
      %p38 = scmp.eq.s32.totalorder %s21, 1
      %p39 = por %p37, %p38
      %p40 = scmp.ne.s32.totalorder %s29, %s30
      %p41 = scmp.eq.s32.totalorder %s21, 0
      %p42 = por %p40, %p41
      %p43 = scmp.ne.s32.totalorder %s29, %s30
      %p44 = scmp.eq.s32.totalorder %s22, 1
      %p45 = por %p43, %p44
      %p47 = scmp.ne.s32.totalorder %s30, %s46
      %p48 = scmp.eq.s32.totalorder %s22, 0
      %p49 = por %p47, %p48
      %s51 = sadd.s32 %s50, 1
      %p54 = scmp.eq.s32.totalorder %s16, 1
      %p55 = scmp.ne.s32.totalorder %s50, %s52
      %p56 = scmp.eq.s32.totalorder %s16, 0
      %p57 = por %p55, %p56
      %p58 = scmp.ne.s32.totalorder %s50, %s52
      %p59 = scmp.eq.s32.totalorder %s21, 1
      %p60 = por %p58, %p59
      %p61 = scmp.ne.s32.totalorder %s52, %s53
      %p62 = scmp.eq.s32.totalorder %s21, 0
      %p63 = por %p61, %p62
      %p64 = scmp.ne.s32.totalorder %s52, %s53
      %p65 = scmp.eq.s32.totalorder %s22, 1
      %p66 = por %p64, %p65
      %p68 = scmp.ne.s32.totalorder %s53, %s67
      %p69 = scmp.eq.s32.totalorder %s22, 0
      %p70 = por %p68, %p69
      %s71 = ssub.s32 %s16, %s23
      %p72 = scmp.eq.s32.totalorder %s71, 0
      %s74 = sadd.s32 %s73, 1
      %s75 = scalar_select %p72, %s73, %s74
      %p78 = pneg %p72
      %p79 = scmp.eq.s32.totalorder %s16, 1
      %p80 = por %p78, %p79
      %p81 = scmp.ne.s32.totalorder %s73, %s76
      %p82 = scmp.eq.s32.totalorder %s16, 0
      %p83 = por %p81, %p82
      %p84 = scmp.ne.s32.totalorder %s73, %s76
      %p85 = scmp.eq.s32.totalorder %s21, 1
      %p86 = por %p84, %p85
      %p87 = scmp.ne.s32.totalorder %s76, %s77
      %p88 = scmp.eq.s32.totalorder %s21, 0
      %p89 = por %p87, %p88
      %p90 = scmp.ne.s32.totalorder %s76, %s77
      %p91 = scmp.eq.s32.totalorder %s22, 1
      %p92 = por %p90, %p91
      %p94 = scmp.ne.s32.totalorder %s77, %s93
      %p95 = scmp.eq.s32.totalorder %s22, 0
      %p96 = por %p94, %p95
      %s97 = ssub.s32 %s16, %s23
      %p98 = scmp.eq.s32.totalorder %s97, 0
      %s100 = sadd.s32 %s99, 1
      %s101 = scalar_select %p98, %s99, %s100
      %p104 = pneg %p98
      %p105 = scmp.eq.s32.totalorder %s16, 1
      %p106 = por %p104, %p105
      %p107 = scmp.ne.s32.totalorder %s99, %s102
      %p108 = scmp.eq.s32.totalorder %s16, 0
      %p109 = por %p107, %p108
      %p110 = scmp.ne.s32.totalorder %s99, %s102
      %p111 = scmp.eq.s32.totalorder %s21, 1
      %p112 = por %p110, %p111
      %p113 = scmp.ne.s32.totalorder %s102, %s103
      %p114 = scmp.eq.s32.totalorder %s21, 0
      %p115 = por %p113, %p114
      %p116 = scmp.ne.s32.totalorder %s102, %s103
      %p117 = scmp.eq.s32.totalorder %s22, 1
      %p118 = por %p116, %p117
      %p120 = scmp.ne.s32.totalorder %s103, %s119
      %p121 = scmp.eq.s32.totalorder %s22, 0
      %p122 = por %p120, %p121
      %p123 = scmp.le.s32.totalorder 1, %s16
      %p124 = scmp.lt.s32.totalorder %s16, 3
      %p125 = pnand %p123, %p124
      %p126 = pneg %p125
      // Predicated region
      $region9: #{tpu_custom_call.1} parent=5 // pred_check
        _
      $region10: #{tpu_custom_call.1} parent=5 // pred_check_branch
        %128 = sbr.rel (%p125) target = $region12
      $region11: #{tpu_custom_call.1} parent=5 // pred_region
        %s129 = ssub.s32 %s16, 1
        // Predicated region
        $region13: #{tpu_custom_call.1} parent=11 // pred_check
          %p130 = pneg %p63
        $region14: #{tpu_custom_call.1} parent=11 // pred_check_branch
          %132 = sbr.rel (%p130) target = $region16
        $region15: #{tpu_custom_call.1} parent=11 // pred_region
          _
        $region16: #{tpu_custom_call.1} parent=11 // pred_fallthru
          _
      $region12: #{tpu_custom_call.1} parent=5 // pred_fallthru
        _
      %p133 = scmp.lt.s32.totalorder %s16, 2
      // Predicated region
      $region17: #{tpu_custom_call.1} parent=5 // pred_check
        %p134 = pneg %p133
      $region18: #{tpu_custom_call.1} parent=5 // pred_check_branch
        %136 = sbr.rel (%p134) target = $region20
      $region19: #{tpu_custom_call.1} parent=5 // pred_region
        // Predicated region
        $region21: #{tpu_custom_call.1} parent=19 // pred_check
          %p137 = pneg %p36
        $region22: #{tpu_custom_call.1} parent=19 // pred_check_branch
          %139 = sbr.rel (%p137) target = $region24
        $region23: #{tpu_custom_call.1} parent=19 // pred_region
          %p140 = scmp.lt.s32.totalorder %s16, 1
          %s141 = scalar_select %p140, %s16, 1
          %s142 = smul.addr %s141, 54
          %s143 = smul.addr %s142, 4
          %s144 = scalar_lea.vmem %s0, %s143
        $region24: #{tpu_custom_call.1} parent=19 // pred_fallthru
          _
      $region20: #{tpu_custom_call.1} parent=5 // pred_fallthru
        _
      %p145 = scmp.le.s32.totalorder 1, %s16
      %p146 = scmp.lt.s32.totalorder %s16, 3
      %p147 = pnand %p145, %p146
      %p148 = pneg %p147
      // Predicated region
      $region25: #{tpu_custom_call.1} parent=5 // pred_check
        _
      $region26: #{tpu_custom_call.1} parent=5 // pred_check_branch
        %150 = sbr.rel (%p147) target = $region28
      $region27: #{tpu_custom_call.1} parent=5 // pred_region
        %s151 = ssub.s32 %s16, 1
        %p152 = scmp.lt.s32.totalorder %s21, 1
        %s153 = scalar_select %p152, %s21, 1
        %s154 = smul.addr %s153, 54
        %s155 = smul.addr %s154, 4
        %s156 = scalar_lea.vmem %s0, %s155
        %p157 = pneg %p42
        %p158 = pneg %p39
        %p159 = pneg %p63
        %p160 = pneg %p60
        %p161 = pneg %p89
        %p162 = pneg %p86
        %s163 = sand.u32 %s76, 1
        %s164 = scalar_lea.sflag [#allocation3], %s163
        %s165 = sand.u32 %s76, 1
        %s166 = smul.addr %s165, 64
        %s167 = scalar_lea.vmem [#allocation2], %s166
        %p168 = pneg %p115
        %p169 = pneg %p112
        %s170 = sand.u32 %s102, 1
        %s171 = scalar_lea.sflag [#allocation5], %s170
        %s172 = sand.u32 %s102, 1
        %s173 = smul.addr %s172, 2
        %s174 = scalar_lea.vmem [#allocation4], %s173
        %p175 = scmp.lt.s32.totalorder %s21, 1
        %s176 = scalar_select %p175, %s21, 1
        %s177 = smul.addr %s176, 54
        %s178 = smul.addr %s177, 4
        %s179 = scalar_lea.vmem %s0, %s178
        %s180 = smul.u32 2, %s21
        %v182 = vld [vmem:[%s179] sm:$0xf]
        %v183 = vld [vmem:[%s179 + $0x4] sm:$0xf]
        %v184 = vld [vmem:[%s179 + $0x8] sm:$0x1]
        %v185 = vld [vmem:[%s179 + $0xc] sm:$0xf]
        %v186 = vld [vmem:[%s179 + $0x10] sm:$0xf]
        %v187 = vld [vmem:[%s179 + $0x14] sm:$0x1]
        %v188 = vld [vmem:[%s179 + $0x18] sm:$0xf]
        %v189 = vld [vmem:[%s179 + $0x1c] sm:$0xf]
        %v190 = vld [vmem:[%s179 + $0x20] sm:$0x1]
        %v191 = vld [vmem:[%s179 + $0x24] sm:$0xf]
        %v192 = vld [vmem:[%s179 + $0x28] sm:$0xf]
        %v193 = vld [vmem:[%s179 + $0x2c] sm:$0x1]
        %v194 = vld [vmem:[%s179 + $0x30] sm:$0xf]
        %v195 = vld [vmem:[%s179 + $0x34] sm:$0xf]
        %v196 = vld [vmem:[%s179 + $0x38] sm:$0x1]
        %v197 = vld [vmem:[%s179 + $0x3c] sm:$0xf]
        %v198 = vld [vmem:[%s179 + $0x40] sm:$0xf]
        %v199 = vld [vmem:[%s179 + $0x44] sm:$0x1]
        %v200 = vld [vmem:[%s179 + $0x48] sm:$0xf]
        %v201 = vld [vmem:[%s179 + $0x4c] sm:$0xf]
        %v202 = vld [vmem:[%s179 + $0x50] sm:$0x1]
        %v203 = vld [vmem:[%s179 + $0x54] sm:$0xf]
        %v204 = vld [vmem:[%s179 + $0x58] sm:$0xf]
        %v205 = vld [vmem:[%s179 + $0x5c] sm:$0x1]
        %v206 = vld [vmem:[%s179 + $0x60] sm:$0xf]
        %v207 = vld [vmem:[%s179 + $0x64] sm:$0xf]
        %v208 = vld [vmem:[%s179 + $0x68] sm:$0x1]
        %v209 = vld [vmem:[%s179 + $0x6c] sm:$0xf]
        %v210 = vld [vmem:[%s179 + $0x70] sm:$0xf]
        %v211 = vld [vmem:[%s179 + $0x74] sm:$0x1]
        %v212 = vld [vmem:[%s179 + $0x78] sm:$0xf]
        %v213 = vld [vmem:[%s179 + $0x7c] sm:$0xf]
        %v214 = vld [vmem:[%s179 + $0x80] sm:$0x1]
        %v215 = vld [vmem:[%s179 + $0x84] sm:$0xf]
        %v216 = vld [vmem:[%s179 + $0x88] sm:$0xf]
        %v217 = vld [vmem:[%s179 + $0x8c] sm:$0x1]
        %v218 = vld [vmem:[%s179 + $0x90] sm:$0xf]
        %v219 = vld [vmem:[%s179 + $0x94] sm:$0xf]
        %v220 = vld [vmem:[%s179 + $0x98] sm:$0x1]
        %v221 = vld [vmem:[%s179 + $0x9c] sm:$0xf]
        %v222 = vld [vmem:[%s179 + $0xa0] sm:$0xf]
        %v223 = vld [vmem:[%s179 + $0xa4] sm:$0x1]
        %v224 = vld [vmem:[%s179 + $0xa8] sm:$0xf]
        %v225 = vld [vmem:[%s179 + $0xac] sm:$0xf]
        %v226 = vld [vmem:[%s179 + $0xb0] sm:$0x1]
        %v227 = vld [vmem:[%s179 + $0xb4] sm:$0xf]
        %v228 = vld [vmem:[%s179 + $0xb8] sm:$0xf]
        %v229 = vld [vmem:[%s179 + $0xbc] sm:$0x1]
        %v230 = vld [vmem:[%s179 + $0xc0] sm:$0xf]
        %v231 = vld [vmem:[%s179 + $0xc4] sm:$0xf]
        %v232 = vld [vmem:[%s179 + $0xc8] sm:$0x1]
        %v233 = vld [vmem:[%s179 + $0xcc] sm:$0xf]
        %v234 = vld [vmem:[%s179 + $0xd0] sm:$0xf]
        %v235 = vld [vmem:[%s179 + $0xd4] sm:$0x1]
        %vm236 = vsmask.f32 3328
        %vm237 = vsmask.f32 7440
        %vm238 = vmor %vm236, %vm237
        %v240 = vshrl.u32 %v182, 16
        %v242 = vrot.slane %v240, 4
        %v243 = vshll.u32 %v182, 16
        %v245 = vrot.slane %v243, 5
        %v246 = vor.u32 %v242, %v245
        %v247 = vrot.slane %v246, 4
        %v249 = vshll.u32 %v183, 16
        %v251 = vrot.slane %v249, 5
        %v252 = vsel %vm238, %v247, %v251
        %v253 = vshrl.u32 %v183, 16
        %v255 = vrot.slane %v253, 4
        %v256 = vor.u32 %v255, %v251
        %v257 = vrot.slane %v256, 4
        %v259 = vshll.u32 %v184, 16
        %v261 = vrot.slane %v259, 5
        %v262 = vsel %vm238, %v257, %v261
        %v264 = vshrl.u32 %v185, 16
        %v266 = vrot.slane %v264, 4
        %v267 = vshll.u32 %v185, 16
        %v269 = vrot.slane %v267, 5
        %v270 = vor.u32 %v266, %v269
        %v271 = vrot.slane %v270, 4
        %v273 = vshll.u32 %v186, 16
        %v275 = vrot.slane %v273, 5
        %v276 = vsel %vm238, %v271, %v275
        %v277 = vshrl.u32 %v186, 16
        %v279 = vrot.slane %v277, 4
        %v280 = vor.u32 %v279, %v275
        %v281 = vrot.slane %v280, 4
        %v283 = vshll.u32 %v187, 16
        %v285 = vrot.slane %v283, 5
        %v286 = vsel %vm238, %v281, %v285
        %v288 = vshrl.u32 %v188, 16
        %v290 = vrot.slane %v288, 4
        %v291 = vshll.u32 %v188, 16
        %v293 = vrot.slane %v291, 5
        %v294 = vor.u32 %v290, %v293
        %v295 = vrot.slane %v294, 4
        %v297 = vshll.u32 %v189, 16
        %v299 = vrot.slane %v297, 5
        %v300 = vsel %vm238, %v295, %v299
        %v301 = vshrl.u32 %v189, 16
        %v303 = vrot.slane %v301, 4
        %v304 = vor.u32 %v303, %v299
        %v305 = vrot.slane %v304, 4
        %v307 = vshll.u32 %v190, 16
        %v309 = vrot.slane %v307, 5
        %v310 = vsel %vm238, %v305, %v309
        %v312 = vshrl.u32 %v191, 16
        %v314 = vrot.slane %v312, 4
        %v315 = vshll.u32 %v191, 16
        %v317 = vrot.slane %v315, 5
        %v318 = vor.u32 %v314, %v317
        %v319 = vrot.slane %v318, 4
        %v321 = vshll.u32 %v192, 16
        %v323 = vrot.slane %v321, 5
        %v324 = vsel %vm238, %v319, %v323
        %v325 = vshrl.u32 %v192, 16
        %v327 = vrot.slane %v325, 4
        %v328 = vor.u32 %v327, %v323
        %v329 = vrot.slane %v328, 4
        %v331 = vshll.u32 %v193, 16
        %v333 = vrot.slane %v331, 5
        %v334 = vsel %vm238, %v329, %v333
        %v336 = vshrl.u32 %v194, 16
        %v338 = vrot.slane %v336, 4
        %v339 = vshll.u32 %v194, 16
        %v341 = vrot.slane %v339, 5
        %v342 = vor.u32 %v338, %v341
        %v343 = vrot.slane %v342, 4
        %v345 = vshll.u32 %v195, 16
        %v347 = vrot.slane %v345, 5
        %v348 = vsel %vm238, %v343, %v347
        %v349 = vshrl.u32 %v195, 16
        %v351 = vrot.slane %v349, 4
        %v352 = vor.u32 %v351, %v347
        %v353 = vrot.slane %v352, 4
        %v355 = vshll.u32 %v196, 16
        %v357 = vrot.slane %v355, 5
        %v358 = vsel %vm238, %v353, %v357
        %v360 = vshrl.u32 %v197, 16
        %v362 = vrot.slane %v360, 4
        %v363 = vshll.u32 %v197, 16
        %v365 = vrot.slane %v363, 5
        %v366 = vor.u32 %v362, %v365
        %v367 = vrot.slane %v366, 4
        %v369 = vshll.u32 %v198, 16
        %v371 = vrot.slane %v369, 5
        %v372 = vsel %vm238, %v367, %v371
        %v373 = vshrl.u32 %v198, 16
        %v375 = vrot.slane %v373, 4
        %v376 = vor.u32 %v375, %v371
        %v377 = vrot.slane %v376, 4
        %v379 = vshll.u32 %v199, 16
        %v381 = vrot.slane %v379, 5
        %v382 = vsel %vm238, %v377, %v381
        %v384 = vshrl.u32 %v200, 16
        %v386 = vrot.slane %v384, 4
        %v387 = vshll.u32 %v200, 16
        %v389 = vrot.slane %v387, 5
        %v390 = vor.u32 %v386, %v389
        %v391 = vrot.slane %v390, 4
        %v393 = vshll.u32 %v201, 16
        %v395 = vrot.slane %v393, 5
        %v396 = vsel %vm238, %v391, %v395
        %v397 = vshrl.u32 %v201, 16
        %v399 = vrot.slane %v397, 4
        %v400 = vor.u32 %v399, %v395
        %v401 = vrot.slane %v400, 4
        %v403 = vshll.u32 %v202, 16
        %v405 = vrot.slane %v403, 5
        %v406 = vsel %vm238, %v401, %v405
        %v408 = vshrl.u32 %v203, 16
        %v410 = vrot.slane %v408, 4
        %v411 = vshll.u32 %v203, 16
        %v413 = vrot.slane %v411, 5
        %v414 = vor.u32 %v410, %v413
        %v415 = vrot.slane %v414, 4
        %v417 = vshll.u32 %v204, 16
        %v419 = vrot.slane %v417, 5
        %v420 = vsel %vm238, %v415, %v419
        %v421 = vshrl.u32 %v204, 16
        %v423 = vrot.slane %v421, 4
        %v424 = vor.u32 %v423, %v419
        %v425 = vrot.slane %v424, 4
        %v427 = vshll.u32 %v205, 16
        %v429 = vrot.slane %v427, 5
        %v430 = vsel %vm238, %v425, %v429
        %v432 = vshrl.u32 %v206, 16
        %v434 = vrot.slane %v432, 4
        %v435 = vshll.u32 %v206, 16
        %v437 = vrot.slane %v435, 5
        %v438 = vor.u32 %v434, %v437
        %v439 = vrot.slane %v438, 4
        %v441 = vshll.u32 %v207, 16
        %v443 = vrot.slane %v441, 5
        %v444 = vsel %vm238, %v439, %v443
        %v445 = vshrl.u32 %v207, 16
        %v447 = vrot.slane %v445, 4
        %v448 = vor.u32 %v447, %v443
        %v449 = vrot.slane %v448, 4
        %v451 = vshll.u32 %v208, 16
        %v453 = vrot.slane %v451, 5
        %v454 = vsel %vm238, %v449, %v453
        %v456 = vshrl.u32 %v209, 16
        %v458 = vrot.slane %v456, 4
        %v459 = vshll.u32 %v209, 16
        %v461 = vrot.slane %v459, 5
        %v462 = vor.u32 %v458, %v461
        %v463 = vrot.slane %v462, 4
        %v465 = vshll.u32 %v210, 16
        %v467 = vrot.slane %v465, 5
        %v468 = vsel %vm238, %v463, %v467
        %v469 = vshrl.u32 %v210, 16
        %v471 = vrot.slane %v469, 4
        %v472 = vor.u32 %v471, %v467
        %v473 = vrot.slane %v472, 4
        %v475 = vshll.u32 %v211, 16
        %v477 = vrot.slane %v475, 5
        %v478 = vsel %vm238, %v473, %v477
        %v480 = vshrl.u32 %v212, 16
        %v482 = vrot.slane %v480, 4
        %v483 = vshll.u32 %v212, 16
        %v485 = vrot.slane %v483, 5
        %v486 = vor.u32 %v482, %v485
        %v487 = vrot.slane %v486, 4
        %v489 = vshll.u32 %v213, 16
        %v491 = vrot.slane %v489, 5
        %v492 = vsel %vm238, %v487, %v491
        %v493 = vshrl.u32 %v213, 16
        %v495 = vrot.slane %v493, 4
        %v496 = vor.u32 %v495, %v491
        %v497 = vrot.slane %v496, 4
        %v499 = vshll.u32 %v214, 16
        %v501 = vrot.slane %v499, 5
        %v502 = vsel %vm238, %v497, %v501
        %v504 = vshrl.u32 %v215, 16
        %v506 = vrot.slane %v504, 4
        %v507 = vshll.u32 %v215, 16
        %v509 = vrot.slane %v507, 5
        %v510 = vor.u32 %v506, %v509
        %v511 = vrot.slane %v510, 4
        %v513 = vshll.u32 %v216, 16
        %v515 = vrot.slane %v513, 5
        %v516 = vsel %vm238, %v511, %v515
        %v517 = vshrl.u32 %v216, 16
        %v519 = vrot.slane %v517, 4
        %v520 = vor.u32 %v519, %v515
        %v521 = vrot.slane %v520, 4
        %v523 = vshll.u32 %v217, 16
        %v525 = vrot.slane %v523, 5
        %v526 = vsel %vm238, %v521, %v525
        %v528 = vshrl.u32 %v218, 16
        %v530 = vrot.slane %v528, 4
        %v531 = vshll.u32 %v218, 16
        %v533 = vrot.slane %v531, 5
        %v534 = vor.u32 %v530, %v533
        %v535 = vrot.slane %v534, 4
        %v537 = vshll.u32 %v219, 16
        %v539 = vrot.slane %v537, 5
        %v540 = vsel %vm238, %v535, %v539
        %v541 = vshrl.u32 %v219, 16
        %v543 = vrot.slane %v541, 4
        %v544 = vor.u32 %v543, %v539
        %v545 = vrot.slane %v544, 4
        %v547 = vshll.u32 %v220, 16
        %v549 = vrot.slane %v547, 5
        %v550 = vsel %vm238, %v545, %v549
        %v552 = vshrl.u32 %v221, 16
        %v554 = vrot.slane %v552, 4
        %v555 = vshll.u32 %v221, 16
        %v557 = vrot.slane %v555, 5
        %v558 = vor.u32 %v554, %v557
        %v559 = vrot.slane %v558, 4
        %v561 = vshll.u32 %v222, 16
        %v563 = vrot.slane %v561, 5
        %v564 = vsel %vm238, %v559, %v563
        %v565 = vshrl.u32 %v222, 16
        %v567 = vrot.slane %v565, 4
        %v568 = vor.u32 %v567, %v563
        %v569 = vrot.slane %v568, 4
        %v571 = vshll.u32 %v223, 16
        %v573 = vrot.slane %v571, 5
        %v574 = vsel %vm238, %v569, %v573
        %v576 = vshrl.u32 %v224, 16
        %v578 = vrot.slane %v576, 4
        %v579 = vshll.u32 %v224, 16
        %v581 = vrot.slane %v579, 5
        %v582 = vor.u32 %v578, %v581
        %v583 = vrot.slane %v582, 4
        %v585 = vshll.u32 %v225, 16
        %v587 = vrot.slane %v585, 5
        %v588 = vsel %vm238, %v583, %v587
        %v589 = vshrl.u32 %v225, 16
        %v591 = vrot.slane %v589, 4
        %v592 = vor.u32 %v591, %v587
        %v593 = vrot.slane %v592, 4
        %v595 = vshll.u32 %v226, 16
        %v597 = vrot.slane %v595, 5
        %v598 = vsel %vm238, %v593, %v597
        %v600 = vshrl.u32 %v227, 16
        %v602 = vrot.slane %v600, 4
        %v603 = vshll.u32 %v227, 16
        %v605 = vrot.slane %v603, 5
        %v606 = vor.u32 %v602, %v605
        %v607 = vrot.slane %v606, 4
        %v609 = vshll.u32 %v228, 16
        %v611 = vrot.slane %v609, 5
        %v612 = vsel %vm238, %v607, %v611
        %v613 = vshrl.u32 %v228, 16
        %v615 = vrot.slane %v613, 4
        %v616 = vor.u32 %v615, %v611
        %v617 = vrot.slane %v616, 4
        %v619 = vshll.u32 %v229, 16
        %v621 = vrot.slane %v619, 5
        %v622 = vsel %vm238, %v617, %v621
        %v624 = vshrl.u32 %v230, 16
        %v626 = vrot.slane %v624, 4
        %v627 = vshll.u32 %v230, 16
        %v629 = vrot.slane %v627, 5
        %v630 = vor.u32 %v626, %v629
        %v631 = vrot.slane %v630, 4
        %v633 = vshll.u32 %v231, 16
        %v635 = vrot.slane %v633, 5
        %v636 = vsel %vm238, %v631, %v635
        %v637 = vshrl.u32 %v231, 16
        %v639 = vrot.slane %v637, 4
        %v640 = vor.u32 %v639, %v635
        %v641 = vrot.slane %v640, 4
        %v643 = vshll.u32 %v232, 16
        %v645 = vrot.slane %v643, 5
        %v646 = vsel %vm238, %v641, %v645
        %v648 = vshrl.u32 %v233, 16
        %v650 = vrot.slane %v648, 4
        %v651 = vshll.u32 %v233, 16
        %v653 = vrot.slane %v651, 5
        %v654 = vor.u32 %v650, %v653
        %v655 = vrot.slane %v654, 4
        %v657 = vshll.u32 %v234, 16
        %v659 = vrot.slane %v657, 5
        %v660 = vsel %vm238, %v655, %v659
        %v661 = vshrl.u32 %v234, 16
        %v663 = vrot.slane %v661, 4
        %v664 = vor.u32 %v663, %v659
        %v665 = vrot.slane %v664, 4
        %v667 = vshll.u32 %v235, 16
        %v669 = vrot.slane %v667, 5
        %v670 = vsel %vm238, %v665, %v669
        %vm725 = vcmask 1042432
        %vm726 = vcmask 1046532
        %vm727 = vmor %vm725, %vm726
        %v728 = vrot.slane %v182, 5
        %v729 = vrot.slane %v728, 4
        %v730 = vrot.slane %v183, 5
        %v731 = vsel %vm727, %v729, %v730
        %v732 = vrot.slane %v730, 4
        %v733 = vrot.slane %v184, 5
        %v734 = vsel %vm727, %v732, %v733
        %v735 = vrot.slane %v185, 5
        %v736 = vrot.slane %v735, 4
        %v737 = vrot.slane %v186, 5
        %v738 = vsel %vm727, %v736, %v737
        %v739 = vrot.slane %v737, 4
        %v740 = vrot.slane %v187, 5
        %v741 = vsel %vm727, %v739, %v740
        %v742 = vrot.slane %v188, 5
        %v743 = vrot.slane %v742, 4
        %v744 = vrot.slane %v189, 5
        %v745 = vsel %vm727, %v743, %v744
        %v746 = vrot.slane %v744, 4
        %v747 = vrot.slane %v190, 5
        %v748 = vsel %vm727, %v746, %v747
        %v749 = vrot.slane %v191, 5
        %v750 = vrot.slane %v749, 4
        %v751 = vrot.slane %v192, 5
        %v752 = vsel %vm727, %v750, %v751
        %v753 = vrot.slane %v751, 4
        %v754 = vrot.slane %v193, 5
        %v755 = vsel %vm727, %v753, %v754
        %v756 = vrot.slane %v194, 5
        %v757 = vrot.slane %v756, 4
        %v758 = vrot.slane %v195, 5
        %v759 = vsel %vm727, %v757, %v758
        %v760 = vrot.slane %v758, 4
        %v761 = vrot.slane %v196, 5
        %v762 = vsel %vm727, %v760, %v761
        %v763 = vrot.slane %v197, 5
        %v764 = vrot.slane %v763, 4
        %v765 = vrot.slane %v198, 5
        %v766 = vsel %vm727, %v764, %v765
        %v767 = vrot.slane %v765, 4
        %v768 = vrot.slane %v199, 5
        %v769 = vsel %vm727, %v767, %v768
        %v770 = vrot.slane %v200, 5
        %v771 = vrot.slane %v770, 4
        %v772 = vrot.slane %v201, 5
        %v773 = vsel %vm727, %v771, %v772
        %v774 = vrot.slane %v772, 4
        %v775 = vrot.slane %v202, 5
        %v776 = vsel %vm727, %v774, %v775
        %v777 = vrot.slane %v203, 5
        %v778 = vrot.slane %v777, 4
        %v779 = vrot.slane %v204, 5
        %v780 = vsel %vm727, %v778, %v779
        %v781 = vrot.slane %v779, 4
        %v782 = vrot.slane %v205, 5
        %v783 = vsel %vm727, %v781, %v782
        %v784 = vrot.slane %v206, 5
        %v785 = vrot.slane %v784, 4
        %v786 = vrot.slane %v207, 5
        %v787 = vsel %vm727, %v785, %v786
        %v788 = vrot.slane %v786, 4
        %v789 = vrot.slane %v208, 5
        %v790 = vsel %vm727, %v788, %v789
        %v791 = vrot.slane %v209, 5
        %v792 = vrot.slane %v791, 4
        %v793 = vrot.slane %v210, 5
        %v794 = vsel %vm727, %v792, %v793
        %v795 = vrot.slane %v793, 4
        %v796 = vrot.slane %v211, 5
        %v797 = vsel %vm727, %v795, %v796
        %v798 = vrot.slane %v212, 5
        %v799 = vrot.slane %v798, 4
        %v800 = vrot.slane %v213, 5
        %v801 = vsel %vm727, %v799, %v800
        %v802 = vrot.slane %v800, 4
        %v803 = vrot.slane %v214, 5
        %v804 = vsel %vm727, %v802, %v803
        %v805 = vrot.slane %v215, 5
        %v806 = vrot.slane %v805, 4
        %v807 = vrot.slane %v216, 5
        %v808 = vsel %vm727, %v806, %v807
        %v809 = vrot.slane %v807, 4
        %v810 = vrot.slane %v217, 5
        %v811 = vsel %vm727, %v809, %v810
        %v812 = vrot.slane %v218, 5
        %v813 = vrot.slane %v812, 4
        %v814 = vrot.slane %v219, 5
        %v815 = vsel %vm727, %v813, %v814
        %v816 = vrot.slane %v814, 4
        %v817 = vrot.slane %v220, 5
        %v818 = vsel %vm727, %v816, %v817
        %v819 = vrot.slane %v221, 5
        %v820 = vrot.slane %v819, 4
        %v821 = vrot.slane %v222, 5
        %v822 = vsel %vm727, %v820, %v821
        %v823 = vrot.slane %v821, 4
        %v824 = vrot.slane %v223, 5
        %v825 = vsel %vm727, %v823, %v824
        %v826 = vrot.slane %v224, 5
        %v827 = vrot.slane %v826, 4
        %v828 = vrot.slane %v225, 5
        %v829 = vsel %vm727, %v827, %v828
        %v830 = vrot.slane %v828, 4
        %v831 = vrot.slane %v226, 5
        %v832 = vsel %vm727, %v830, %v831
        %v833 = vrot.slane %v227, 5
        %v834 = vrot.slane %v833, 4
        %v835 = vrot.slane %v228, 5
        %v836 = vsel %vm727, %v834, %v835
        %v837 = vrot.slane %v835, 4
        %v838 = vrot.slane %v229, 5
        %v839 = vsel %vm727, %v837, %v838
        %v840 = vrot.slane %v230, 5
        %v841 = vrot.slane %v840, 4
        %v842 = vrot.slane %v231, 5
        %v843 = vsel %vm727, %v841, %v842
        %v844 = vrot.slane %v842, 4
        %v845 = vrot.slane %v232, 5
        %v846 = vsel %vm727, %v844, %v845
        %v847 = vrot.slane %v233, 5
        %v848 = vrot.slane %v847, 4
        %v849 = vrot.slane %v234, 5
        %v850 = vsel %vm727, %v848, %v849
        %v851 = vrot.slane %v849, 4
        %v852 = vrot.slane %v235, 5
        %v853 = vsel %vm727, %v851, %v852
        %v854 = vunpack.c.l.b16 %v182
        %v855 = vunpack.c.l.b16 %v183
        %v856 = vunpack.c.l.b16 %v185
        %v857 = vunpack.c.l.b16 %v186
        %v858 = vunpack.c.l.b16 %v188
        %v859 = vunpack.c.l.b16 %v189
        %v860 = vunpack.c.l.b16 %v191
        %v861 = vunpack.c.l.b16 %v192
        %v862 = vunpack.c.l.b16 %v194
        %v863 = vunpack.c.l.b16 %v195
        %v864 = vunpack.c.l.b16 %v197
        %v865 = vunpack.c.l.b16 %v198
        %v866 = vunpack.c.l.b16 %v200
        %v867 = vunpack.c.l.b16 %v201
        %v868 = vunpack.c.l.b16 %v203
        %v869 = vunpack.c.l.b16 %v204
        %v870 = vunpack.c.l.b16 %v206
        %v871 = vunpack.c.l.b16 %v207
        %v872 = vunpack.c.l.b16 %v209
        %v873 = vunpack.c.l.b16 %v210
        %v874 = vunpack.c.l.b16 %v212
        %v875 = vunpack.c.l.b16 %v213
        %v876 = vunpack.c.l.b16 %v215
        %v877 = vunpack.c.l.b16 %v216
        %v878 = vunpack.c.l.b16 %v218
        %v879 = vunpack.c.l.b16 %v219
        %v880 = vunpack.c.l.b16 %v221
        %v881 = vunpack.c.l.b16 %v222
        %v882 = vunpack.c.l.b16 %v224
        %v883 = vunpack.c.l.b16 %v225
        %v884 = vunpack.c.l.b16 %v227
        %v885 = vunpack.c.l.b16 %v228
        %v886 = vpack.c.b16 %v855, %v854
        %v887 = vpack.c.b16 %v857, %v856
        %v888 = vpack.c.b16 %v859, %v858
        %v889 = vpack.c.b16 %v861, %v860
        %v890 = vpack.c.b16 %v863, %v862
        %v891 = vpack.c.b16 %v865, %v864
        %v892 = vpack.c.b16 %v867, %v866
        %v893 = vpack.c.b16 %v869, %v868
        %v894 = vpack.c.b16 %v871, %v870
        %v895 = vpack.c.b16 %v873, %v872
        %v896 = vpack.c.b16 %v875, %v874
        %v897 = vpack.c.b16 %v877, %v876
        %v898 = vpack.c.b16 %v879, %v878
        %v899 = vpack.c.b16 %v881, %v880
        %v900 = vpack.c.b16 %v883, %v882
        %v901 = vpack.c.b16 %v885, %v884
        %v902 = vunpack.c.l.b16 %v252
        %v903 = vunpack.c.l.b16 %v262
        %v904 = vunpack.c.l.b16 %v276
        %v905 = vunpack.c.l.b16 %v286
        %v906 = vunpack.c.l.b16 %v300
        %v907 = vunpack.c.l.b16 %v310
        %v908 = vunpack.c.l.b16 %v324
        %v909 = vunpack.c.l.b16 %v334
        %v910 = vunpack.c.l.b16 %v348
        %v911 = vunpack.c.l.b16 %v358
        %v912 = vunpack.c.l.b16 %v372
        %v913 = vunpack.c.l.b16 %v382
        %v914 = vunpack.c.l.b16 %v396
        %v915 = vunpack.c.l.b16 %v406
        %v916 = vunpack.c.l.b16 %v420
        %v917 = vunpack.c.l.b16 %v430
        %v918 = vunpack.c.l.b16 %v444
        %v919 = vunpack.c.l.b16 %v454
        %v920 = vunpack.c.l.b16 %v468
        %v921 = vunpack.c.l.b16 %v478
        %v922 = vunpack.c.l.b16 %v492
        %v923 = vunpack.c.l.b16 %v502
        %v924 = vunpack.c.l.b16 %v516
        %v925 = vunpack.c.l.b16 %v526
        %v926 = vunpack.c.l.b16 %v540
        %v927 = vunpack.c.l.b16 %v550
        %v928 = vunpack.c.l.b16 %v564
        %v929 = vunpack.c.l.b16 %v574
        %v930 = vunpack.c.l.b16 %v588
        %v931 = vunpack.c.l.b16 %v598
        %v932 = vunpack.c.l.b16 %v612
        %v933 = vunpack.c.l.b16 %v622
        %v934 = vpack.c.b16 %v903, %v902
        %v935 = vpack.c.b16 %v905, %v904
        %v936 = vpack.c.b16 %v907, %v906
        %v937 = vpack.c.b16 %v909, %v908
        %v938 = vpack.c.b16 %v911, %v910
        %v939 = vpack.c.b16 %v913, %v912
        %v940 = vpack.c.b16 %v915, %v914
        %v941 = vpack.c.b16 %v917, %v916
        %v942 = vpack.c.b16 %v919, %v918
        %v943 = vpack.c.b16 %v921, %v920
        %v944 = vpack.c.b16 %v923, %v922
        %v945 = vpack.c.b16 %v925, %v924
        %v946 = vpack.c.b16 %v927, %v926
        %v947 = vpack.c.b16 %v929, %v928
        %v948 = vpack.c.b16 %v931, %v930
        %v949 = vpack.c.b16 %v933, %v932
        %950 = vrot.lane.b32.xlu0 %v934, 4
        %v951 = vpop.permute.xlu0 %950
        %952 = vrot.lane.b32.xlu0 %v935, 4
        %v953 = vpop.permute.xlu0 %952
        %954 = vrot.lane.b32.xlu0 %v936, 4
        %v955 = vpop.permute.xlu0 %954
        %956 = vrot.lane.b32.xlu0 %v937, 4
        %v957 = vpop.permute.xlu0 %956
        %958 = vrot.lane.b32.xlu0 %v938, 4
        %v959 = vpop.permute.xlu0 %958
        %960 = vrot.lane.b32.xlu0 %v939, 4
        %v961 = vpop.permute.xlu0 %960
        %962 = vrot.lane.b32.xlu0 %v940, 4
        %v963 = vpop.permute.xlu0 %962
        %964 = vrot.lane.b32.xlu0 %v941, 4
        %v965 = vpop.permute.xlu0 %964
        %966 = vrot.lane.b32.xlu0 %v942, 4
        %v967 = vpop.permute.xlu0 %966
        %968 = vrot.lane.b32.xlu0 %v943, 4
        %v969 = vpop.permute.xlu0 %968
        %970 = vrot.lane.b32.xlu0 %v944, 4
        %v971 = vpop.permute.xlu0 %970
        %972 = vrot.lane.b32.xlu0 %v945, 4
        %v973 = vpop.permute.xlu0 %972
        %974 = vrot.lane.b32.xlu0 %v946, 4
        %v975 = vpop.permute.xlu0 %974
        %976 = vrot.lane.b32.xlu0 %v947, 4
        %v977 = vpop.permute.xlu0 %976
        %978 = vrot.lane.b32.xlu0 %v948, 4
        %v979 = vpop.permute.xlu0 %978
        %980 = vrot.lane.b32.xlu0 %v949, 4
        %v981 = vpop.permute.xlu0 %980
        %v982 = vunpack.c.l.b16 %v731
        %v983 = vunpack.c.l.b16 %v734
        %v984 = vunpack.c.l.b16 %v738
        %v985 = vunpack.c.l.b16 %v741
        %v986 = vunpack.c.l.b16 %v745
        %v987 = vunpack.c.l.b16 %v748
        %v988 = vunpack.c.l.b16 %v752
        %v989 = vunpack.c.l.b16 %v755
        %v990 = vunpack.c.l.b16 %v759
        %v991 = vunpack.c.l.b16 %v762
        %v992 = vunpack.c.l.b16 %v766
        %v993 = vunpack.c.l.b16 %v769
        %v994 = vunpack.c.l.b16 %v773
        %v995 = vunpack.c.l.b16 %v776
        %v996 = vunpack.c.l.b16 %v780
        %v997 = vunpack.c.l.b16 %v783
        %v998 = vunpack.c.l.b16 %v787
        %v999 = vunpack.c.l.b16 %v790
        %v1000 = vunpack.c.l.b16 %v794
        %v1001 = vunpack.c.l.b16 %v797
        %v1002 = vunpack.c.l.b16 %v801
        %v1003 = vunpack.c.l.b16 %v804
        %v1004 = vunpack.c.l.b16 %v808
        %v1005 = vunpack.c.l.b16 %v811
        %v1006 = vunpack.c.l.b16 %v815
        %v1007 = vunpack.c.l.b16 %v818
        %v1008 = vunpack.c.l.b16 %v822
        %v1009 = vunpack.c.l.b16 %v825
        %v1010 = vunpack.c.l.b16 %v829
        %v1011 = vunpack.c.l.b16 %v832
        %v1012 = vunpack.c.l.b16 %v836
        %v1013 = vunpack.c.l.b16 %v839
        %v1014 = vpack.c.b16 %v983, %v982
        %v1015 = vpack.c.b16 %v985, %v984
        %v1016 = vpack.c.b16 %v987, %v986
        %v1017 = vpack.c.b16 %v989, %v988
        %v1018 = vpack.c.b16 %v991, %v990
        %v1019 = vpack.c.b16 %v993, %v992
        %v1020 = vpack.c.b16 %v995, %v994
        %v1021 = vpack.c.b16 %v997, %v996
        %v1022 = vpack.c.b16 %v999, %v998
        %v1023 = vpack.c.b16 %v1001, %v1000
        %v1024 = vpack.c.b16 %v1003, %v1002
        %v1025 = vpack.c.b16 %v1005, %v1004
        %v1026 = vpack.c.b16 %v1007, %v1006
        %v1027 = vpack.c.b16 %v1009, %v1008
        %v1028 = vpack.c.b16 %v1011, %v1010
        %v1029 = vpack.c.b16 %v1013, %v1012
        %1030 = vrot.lane.b32.xlu0 %v1014, 8
        %v1031 = vpop.permute.xlu0 %1030
        %1032 = vrot.lane.b32.xlu0 %v1015, 8
        %v1033 = vpop.permute.xlu0 %1032
        %1034 = vrot.lane.b32.xlu0 %v1016, 8
        %v1035 = vpop.permute.xlu0 %1034
        %1036 = vrot.lane.b32.xlu0 %v1017, 8
        %v1037 = vpop.permute.xlu0 %1036
        %1038 = vrot.lane.b32.xlu0 %v1018, 8
        %v1039 = vpop.permute.xlu0 %1038
        %1040 = vrot.lane.b32.xlu0 %v1019, 8
        %v1041 = vpop.permute.xlu0 %1040
        %1042 = vrot.lane.b32.xlu0 %v1020, 8
        %v1043 = vpop.permute.xlu0 %1042
        %1044 = vrot.lane.b32.xlu0 %v1021, 8
        %v1045 = vpop.permute.xlu0 %1044
        %1046 = vrot.lane.b32.xlu0 %v1022, 8
        %v1047 = vpop.permute.xlu0 %1046
        %1048 = vrot.lane.b32.xlu0 %v1023, 8
        %v1049 = vpop.permute.xlu0 %1048
        %1050 = vrot.lane.b32.xlu0 %v1024, 8
        %v1051 = vpop.permute.xlu0 %1050
        %1052 = vrot.lane.b32.xlu0 %v1025, 8
        %v1053 = vpop.permute.xlu0 %1052
        %1054 = vrot.lane.b32.xlu0 %v1026, 8
        %v1055 = vpop.permute.xlu0 %1054
        %1056 = vrot.lane.b32.xlu0 %v1027, 8
        %v1057 = vpop.permute.xlu0 %1056
        %1058 = vrot.lane.b32.xlu0 %v1028, 8
        %v1059 = vpop.permute.xlu0 %1058
        %1060 = vrot.lane.b32.xlu0 %v1029, 8
        %v1061 = vpop.permute.xlu0 %1060
        %v1062 = vunpack.c.l.b16 %v230
        %v1063 = vunpack.c.l.b16 %v231
        %v1064 = vpack.c.b16 %v1063, %v1062
        %1065 = vrot.lane.b32.xlu0 %v887, 12
        %v1066 = vpop.permute.xlu0 %1065
        %1067 = vrot.lane.b32.xlu0 %v888, 12
        %v1068 = vpop.permute.xlu0 %1067
        %1069 = vrot.lane.b32.xlu0 %v889, 12
        %v1070 = vpop.permute.xlu0 %1069
        %1071 = vrot.lane.b32.xlu0 %v890, 12
        %v1072 = vpop.permute.xlu0 %1071
        %1073 = vrot.lane.b32.xlu0 %v891, 12
        %v1074 = vpop.permute.xlu0 %1073
        %1075 = vrot.lane.b32.xlu0 %v892, 12
        %v1076 = vpop.permute.xlu0 %1075
        %1077 = vrot.lane.b32.xlu0 %v893, 12
        %v1078 = vpop.permute.xlu0 %1077
        %1079 = vrot.lane.b32.xlu0 %v894, 12
        %v1080 = vpop.permute.xlu0 %1079
        %1081 = vrot.lane.b32.xlu0 %v895, 12
        %v1082 = vpop.permute.xlu0 %1081
        %1083 = vrot.lane.b32.xlu0 %v896, 12
        %v1084 = vpop.permute.xlu0 %1083
        %1085 = vrot.lane.b32.xlu0 %v897, 12
        %v1086 = vpop.permute.xlu0 %1085
        %1087 = vrot.lane.b32.xlu0 %v898, 12
        %v1088 = vpop.permute.xlu0 %1087
        %1089 = vrot.lane.b32.xlu0 %v899, 12
        %v1090 = vpop.permute.xlu0 %1089
        %1091 = vrot.lane.b32.xlu0 %v900, 12
        %v1092 = vpop.permute.xlu0 %1091
        %1093 = vrot.lane.b32.xlu0 %v901, 12
        %v1094 = vpop.permute.xlu0 %1093
        %1095 = vrot.lane.b32.xlu0 %v1064, 12
        %v1096 = vpop.permute.xlu0 %1095
        %v1097 = vunpack.c.l.b16 %v636
        %v1098 = vunpack.c.l.b16 %v646
        %v1099 = vpack.c.b16 %v1098, %v1097
        %1100 = vrot.lane.b32.xlu0 %v935, 16
        %v1101 = vpop.permute.xlu0 %1100
        %1102 = vrot.lane.b32.xlu0 %v936, 16
        %v1103 = vpop.permute.xlu0 %1102
        %1104 = vrot.lane.b32.xlu0 %v937, 16
        %v1105 = vpop.permute.xlu0 %1104
        %1106 = vrot.lane.b32.xlu0 %v938, 16
        %v1107 = vpop.permute.xlu0 %1106
        %1108 = vrot.lane.b32.xlu0 %v939, 16
        %v1109 = vpop.permute.xlu0 %1108
        %1110 = vrot.lane.b32.xlu0 %v940, 16
        %v1111 = vpop.permute.xlu0 %1110
        %1112 = vrot.lane.b32.xlu0 %v941, 16
        %v1113 = vpop.permute.xlu0 %1112
        %1114 = vrot.lane.b32.xlu0 %v942, 16
        %v1115 = vpop.permute.xlu0 %1114
        %1116 = vrot.lane.b32.xlu0 %v943, 16
        %v1117 = vpop.permute.xlu0 %1116
        %1118 = vrot.lane.b32.xlu0 %v944, 16
        %v1119 = vpop.permute.xlu0 %1118
        %1120 = vrot.lane.b32.xlu0 %v945, 16
        %v1121 = vpop.permute.xlu0 %1120
        %1122 = vrot.lane.b32.xlu0 %v946, 16
        %v1123 = vpop.permute.xlu0 %1122
        %1124 = vrot.lane.b32.xlu0 %v947, 16
        %v1125 = vpop.permute.xlu0 %1124
        %1126 = vrot.lane.b32.xlu0 %v948, 16
        %v1127 = vpop.permute.xlu0 %1126
        %1128 = vrot.lane.b32.xlu0 %v949, 16
        %v1129 = vpop.permute.xlu0 %1128
        %1130 = vrot.lane.b32.xlu0 %v1099, 16
        %v1131 = vpop.permute.xlu0 %1130
        %v1132 = vunpack.c.l.b16 %v843
        %v1133 = vunpack.c.l.b16 %v846
        %v1134 = vpack.c.b16 %v1133, %v1132
        %1135 = vrot.lane.b32.xlu0 %v1015, 20
        %v1136 = vpop.permute.xlu0 %1135
        %1137 = vrot.lane.b32.xlu0 %v1016, 20
        %v1138 = vpop.permute.xlu0 %1137
        %1139 = vrot.lane.b32.xlu0 %v1017, 20
        %v1140 = vpop.permute.xlu0 %1139
        %1141 = vrot.lane.b32.xlu0 %v1018, 20
        %v1142 = vpop.permute.xlu0 %1141
        %1143 = vrot.lane.b32.xlu0 %v1019, 20
        %v1144 = vpop.permute.xlu0 %1143
        %1145 = vrot.lane.b32.xlu0 %v1020, 20
        %v1146 = vpop.permute.xlu0 %1145
        %1147 = vrot.lane.b32.xlu0 %v1021, 20
        %v1148 = vpop.permute.xlu0 %1147
        %1149 = vrot.lane.b32.xlu0 %v1022, 20
        %v1150 = vpop.permute.xlu0 %1149
        %1151 = vrot.lane.b32.xlu0 %v1023, 20
        %v1152 = vpop.permute.xlu0 %1151
        %1153 = vrot.lane.b32.xlu0 %v1024, 20
        %v1154 = vpop.permute.xlu0 %1153
        %1155 = vrot.lane.b32.xlu0 %v1025, 20
        %v1156 = vpop.permute.xlu0 %1155
        %1157 = vrot.lane.b32.xlu0 %v1026, 20
        %v1158 = vpop.permute.xlu0 %1157
        %1159 = vrot.lane.b32.xlu0 %v1027, 20
        %v1160 = vpop.permute.xlu0 %1159
        %1161 = vrot.lane.b32.xlu0 %v1028, 20
        %v1162 = vpop.permute.xlu0 %1161
        %1163 = vrot.lane.b32.xlu0 %v1029, 20
        %v1164 = vpop.permute.xlu0 %1163
        %1165 = vrot.lane.b32.xlu0 %v1134, 20
        %v1166 = vpop.permute.xlu0 %1165
        %v1167 = vunpack.c.l.b16 %v233
        %v1168 = vunpack.c.l.b16 %v234
        %v1169 = vpack.c.b16 %v1168, %v1167
        %1170 = vrot.lane.b32.xlu0 %v888, 24
        %v1171 = vpop.permute.xlu0 %1170
        %1172 = vrot.lane.b32.xlu0 %v889, 24
        %v1173 = vpop.permute.xlu0 %1172
        %1174 = vrot.lane.b32.xlu0 %v890, 24
        %v1175 = vpop.permute.xlu0 %1174
        %1176 = vrot.lane.b32.xlu0 %v891, 24
        %v1177 = vpop.permute.xlu0 %1176
        %1178 = vrot.lane.b32.xlu0 %v892, 24
        %v1179 = vpop.permute.xlu0 %1178
        %1180 = vrot.lane.b32.xlu0 %v893, 24
        %v1181 = vpop.permute.xlu0 %1180
        %1182 = vrot.lane.b32.xlu0 %v894, 24
        %v1183 = vpop.permute.xlu0 %1182
        %1184 = vrot.lane.b32.xlu0 %v895, 24
        %v1185 = vpop.permute.xlu0 %1184
        %1186 = vrot.lane.b32.xlu0 %v896, 24
        %v1187 = vpop.permute.xlu0 %1186
        %1188 = vrot.lane.b32.xlu0 %v897, 24
        %v1189 = vpop.permute.xlu0 %1188
        %1190 = vrot.lane.b32.xlu0 %v898, 24
        %v1191 = vpop.permute.xlu0 %1190
        %1192 = vrot.lane.b32.xlu0 %v899, 24
        %v1193 = vpop.permute.xlu0 %1192
        %1194 = vrot.lane.b32.xlu0 %v900, 24
        %v1195 = vpop.permute.xlu0 %1194
        %1196 = vrot.lane.b32.xlu0 %v901, 24
        %v1197 = vpop.permute.xlu0 %1196
        %1198 = vrot.lane.b32.xlu0 %v1064, 24
        %v1199 = vpop.permute.xlu0 %1198
        %1200 = vrot.lane.b32.xlu0 %v1169, 24
        %v1201 = vpop.permute.xlu0 %1200
        %v1202 = vunpack.c.l.b16 %v660
        %v1203 = vunpack.c.l.b16 %v670
        %v1204 = vpack.c.b16 %v1203, %v1202
        %1205 = vrot.lane.b32.xlu0 %v936, 28
        %v1206 = vpop.permute.xlu0 %1205
        %1207 = vrot.lane.b32.xlu0 %v937, 28
        %v1208 = vpop.permute.xlu0 %1207
        %1209 = vrot.lane.b32.xlu0 %v938, 28
        %v1210 = vpop.permute.xlu0 %1209
        %1211 = vrot.lane.b32.xlu0 %v939, 28
        %v1212 = vpop.permute.xlu0 %1211
        %1213 = vrot.lane.b32.xlu0 %v940, 28
        %v1214 = vpop.permute.xlu0 %1213
        %1215 = vrot.lane.b32.xlu0 %v941, 28
        %v1216 = vpop.permute.xlu0 %1215
        %1217 = vrot.lane.b32.xlu0 %v942, 28
        %v1218 = vpop.permute.xlu0 %1217
        %1219 = vrot.lane.b32.xlu0 %v943, 28
        %v1220 = vpop.permute.xlu0 %1219
        %1221 = vrot.lane.b32.xlu0 %v944, 28
        %v1222 = vpop.permute.xlu0 %1221
        %1223 = vrot.lane.b32.xlu0 %v945, 28
        %v1224 = vpop.permute.xlu0 %1223
        %1225 = vrot.lane.b32.xlu0 %v946, 28
        %v1226 = vpop.permute.xlu0 %1225
        %1227 = vrot.lane.b32.xlu0 %v947, 28
        %v1228 = vpop.permute.xlu0 %1227
        %1229 = vrot.lane.b32.xlu0 %v948, 28
        %v1230 = vpop.permute.xlu0 %1229
        %1231 = vrot.lane.b32.xlu0 %v949, 28
        %v1232 = vpop.permute.xlu0 %1231
        %1233 = vrot.lane.b32.xlu0 %v1099, 28
        %v1234 = vpop.permute.xlu0 %1233
        %1235 = vrot.lane.b32.xlu0 %v1204, 28
        %v1236 = vpop.permute.xlu0 %1235
        %v1237 = vunpack.c.l.b16 %v850
        %v1238 = vunpack.c.l.b16 %v853
        %v1239 = vpack.c.b16 %v1238, %v1237
        %1240 = vrot.lane.b32.xlu0 %v1016, 32
        %v1241 = vpop.permute.xlu0 %1240
        %1242 = vrot.lane.b32.xlu0 %v1017, 32
        %v1243 = vpop.permute.xlu0 %1242
        %1244 = vrot.lane.b32.xlu0 %v1018, 32
        %v1245 = vpop.permute.xlu0 %1244
        %1246 = vrot.lane.b32.xlu0 %v1019, 32
        %v1247 = vpop.permute.xlu0 %1246
        %1248 = vrot.lane.b32.xlu0 %v1020, 32
        %v1249 = vpop.permute.xlu0 %1248
        %1250 = vrot.lane.b32.xlu0 %v1021, 32
        %v1251 = vpop.permute.xlu0 %1250
        %1252 = vrot.lane.b32.xlu0 %v1022, 32
        %v1253 = vpop.permute.xlu0 %1252
        %1254 = vrot.lane.b32.xlu0 %v1023, 32
        %v1255 = vpop.permute.xlu0 %1254
        %1256 = vrot.lane.b32.xlu0 %v1024, 32
        %v1257 = vpop.permute.xlu0 %1256
        %1258 = vrot.lane.b32.xlu0 %v1025, 32
        %v1259 = vpop.permute.xlu0 %1258
        %1260 = vrot.lane.b32.xlu0 %v1026, 32
        %v1261 = vpop.permute.xlu0 %1260
        %1262 = vrot.lane.b32.xlu0 %v1027, 32
        %v1263 = vpop.permute.xlu0 %1262
        %1264 = vrot.lane.b32.xlu0 %v1028, 32
        %v1265 = vpop.permute.xlu0 %1264
        %1266 = vrot.lane.b32.xlu0 %v1029, 32
        %v1267 = vpop.permute.xlu0 %1266
        %1268 = vrot.lane.b32.xlu0 %v1134, 32
        %v1269 = vpop.permute.xlu0 %1268
        %1270 = vrot.lane.b32.xlu0 %v1239, 32
        %v1271 = vpop.permute.xlu0 %1270
        %vm1272 = vcmask 31744
        %v1275 = vsel %vm1272, %v886, %v951
        %v1278 = vsel %vm1272, %v887, %v953
        %v1281 = vsel %vm1272, %v888, %v955
        %v1284 = vsel %vm1272, %v889, %v957
        %v1287 = vsel %vm1272, %v890, %v959
        %v1290 = vsel %vm1272, %v891, %v961
        %v1293 = vsel %vm1272, %v892, %v963
        %v1296 = vsel %vm1272, %v893, %v965
        %v1299 = vsel %vm1272, %v894, %v967
        %v1302 = vsel %vm1272, %v895, %v969
        %v1305 = vsel %vm1272, %v896, %v971
        %v1308 = vsel %vm1272, %v897, %v973
        %v1311 = vsel %vm1272, %v898, %v975
        %v1314 = vsel %vm1272, %v899, %v977
        %v1317 = vsel %vm1272, %v900, %v979
        %v1320 = vsel %vm1272, %v901, %v981
        %vm1321 = vcmask 64512
        %v1323 = vsel %vm1321, %v1275, %v1031
        %v1325 = vsel %vm1321, %v1278, %v1033
        %v1327 = vsel %vm1321, %v1281, %v1035
        %v1329 = vsel %vm1321, %v1284, %v1037
        %v1331 = vsel %vm1321, %v1287, %v1039
        %v1333 = vsel %vm1321, %v1290, %v1041
        %v1335 = vsel %vm1321, %v1293, %v1043
        %v1337 = vsel %vm1321, %v1296, %v1045
        %v1339 = vsel %vm1321, %v1299, %v1047
        %v1341 = vsel %vm1321, %v1302, %v1049
        %v1343 = vsel %vm1321, %v1305, %v1051
        %v1345 = vsel %vm1321, %v1308, %v1053
        %v1347 = vsel %vm1321, %v1311, %v1055
        %v1349 = vsel %vm1321, %v1314, %v1057
        %v1351 = vsel %vm1321, %v1317, %v1059
        %v1353 = vsel %vm1321, %v1320, %v1061
        %vm1354 = vcmask 97280
        %v1356 = vsel %vm1354, %v1323, %v1066
        %v1358 = vsel %vm1354, %v1325, %v1068
        %v1360 = vsel %vm1354, %v1327, %v1070
        %v1362 = vsel %vm1354, %v1329, %v1072
        %v1364 = vsel %vm1354, %v1331, %v1074
        %v1366 = vsel %vm1354, %v1333, %v1076
        %v1368 = vsel %vm1354, %v1335, %v1078
        %v1370 = vsel %vm1354, %v1337, %v1080
        %v1372 = vsel %vm1354, %v1339, %v1082
        %v1374 = vsel %vm1354, %v1341, %v1084
        %v1376 = vsel %vm1354, %v1343, %v1086
        %v1378 = vsel %vm1354, %v1345, %v1088
        %v1380 = vsel %vm1354, %v1347, %v1090
        %v1382 = vsel %vm1354, %v1349, %v1092
        %v1384 = vsel %vm1354, %v1351, %v1094
        %v1386 = vsel %vm1354, %v1353, %v1096
        %vm1387 = vcmask 130048
        %v1389 = vsel %vm1387, %v1356, %v1101
        %v1391 = vsel %vm1387, %v1358, %v1103
        %v1393 = vsel %vm1387, %v1360, %v1105
        %v1395 = vsel %vm1387, %v1362, %v1107
        %v1397 = vsel %vm1387, %v1364, %v1109
        %v1399 = vsel %vm1387, %v1366, %v1111
        %v1401 = vsel %vm1387, %v1368, %v1113
        %v1403 = vsel %vm1387, %v1370, %v1115
        %v1405 = vsel %vm1387, %v1372, %v1117
        %v1407 = vsel %vm1387, %v1374, %v1119
        %v1409 = vsel %vm1387, %v1376, %v1121
        %v1411 = vsel %vm1387, %v1378, %v1123
        %v1413 = vsel %vm1387, %v1380, %v1125
        %v1415 = vsel %vm1387, %v1382, %v1127
        %v1417 = vsel %vm1387, %v1384, %v1129
        %v1419 = vsel %vm1387, %v1386, %v1131
        %vm1420 = vcmask 162816
        %v1422 = vsel %vm1420, %v1389, %v1136
        %v1424 = vsel %vm1420, %v1391, %v1138
        %v1426 = vsel %vm1420, %v1393, %v1140
        %v1428 = vsel %vm1420, %v1395, %v1142
        %v1430 = vsel %vm1420, %v1397, %v1144
        %v1432 = vsel %vm1420, %v1399, %v1146
        %v1434 = vsel %vm1420, %v1401, %v1148
        %v1436 = vsel %vm1420, %v1403, %v1150
        %v1438 = vsel %vm1420, %v1405, %v1152
        %v1440 = vsel %vm1420, %v1407, %v1154
        %v1442 = vsel %vm1420, %v1409, %v1156
        %v1444 = vsel %vm1420, %v1411, %v1158
        %v1446 = vsel %vm1420, %v1413, %v1160
        %v1448 = vsel %vm1420, %v1415, %v1162
        %v1450 = vsel %vm1420, %v1417, %v1164
        %v1452 = vsel %vm1420, %v1419, %v1166
        %vm1453 = vcmask 195584
        %v1455 = vsel %vm1453, %v1422, %v1171
        %v1457 = vsel %vm1453, %v1424, %v1173
        %v1459 = vsel %vm1453, %v1426, %v1175
        %v1461 = vsel %vm1453, %v1428, %v1177
        %v1463 = vsel %vm1453, %v1430, %v1179
        %v1465 = vsel %vm1453, %v1432, %v1181
        %v1467 = vsel %vm1453, %v1434, %v1183
        %v1469 = vsel %vm1453, %v1436, %v1185
        %v1471 = vsel %vm1453, %v1438, %v1187
        %v1473 = vsel %vm1453, %v1440, %v1189
        %v1475 = vsel %vm1453, %v1442, %v1191
        %v1477 = vsel %vm1453, %v1444, %v1193
        %v1479 = vsel %vm1453, %v1446, %v1195
        %v1481 = vsel %vm1453, %v1448, %v1197
        %v1483 = vsel %vm1453, %v1450, %v1199
        %v1485 = vsel %vm1453, %v1452, %v1201
        %vm1486 = vcmask 228352
        %v1488 = vsel %vm1486, %v1455, %v1206
        %v1490 = vsel %vm1486, %v1457, %v1208
        %v1492 = vsel %vm1486, %v1459, %v1210
        %v1494 = vsel %vm1486, %v1461, %v1212
        %v1496 = vsel %vm1486, %v1463, %v1214
        %v1498 = vsel %vm1486, %v1465, %v1216
        %v1500 = vsel %vm1486, %v1467, %v1218
        %v1502 = vsel %vm1486, %v1469, %v1220
        %v1504 = vsel %vm1486, %v1471, %v1222
        %v1506 = vsel %vm1486, %v1473, %v1224
        %v1508 = vsel %vm1486, %v1475, %v1226
        %v1510 = vsel %vm1486, %v1477, %v1228
        %v1512 = vsel %vm1486, %v1479, %v1230
        %v1514 = vsel %vm1486, %v1481, %v1232
        %v1516 = vsel %vm1486, %v1483, %v1234
        %v1518 = vsel %vm1486, %v1485, %v1236
        %vm1519 = vcmask 261120
        %v1521 = vsel %vm1519, %v1488, %v1241
        %v1523 = vsel %vm1519, %v1490, %v1243
        %v1525 = vsel %vm1519, %v1492, %v1245
        %v1527 = vsel %vm1519, %v1494, %v1247
        %v1529 = vsel %vm1519, %v1496, %v1249
        %v1531 = vsel %vm1519, %v1498, %v1251
        %v1533 = vsel %vm1519, %v1500, %v1253
        %v1535 = vsel %vm1519, %v1502, %v1255
        %v1537 = vsel %vm1519, %v1504, %v1257
        %v1539 = vsel %vm1519, %v1506, %v1259
        %v1541 = vsel %vm1519, %v1508, %v1261
        %v1543 = vsel %vm1519, %v1510, %v1263
        %v1545 = vsel %vm1519, %v1512, %v1265
        %v1547 = vsel %vm1519, %v1514, %v1267
        %v1549 = vsel %vm1519, %v1516, %v1269
        %v1551 = vsel %vm1519, %v1518, %v1271
        %v1552 = vld [vmem:[%s1] sm:$0xf]
        %v1553 = vld [vmem:[%s1 + $0x4] sm:$0xf]
        %v1554 = vld [vmem:[%s1 + $0x8] sm:$0xf]
        %v1555 = vld [vmem:[%s1 + $0xc] sm:$0xf]
        %v1556 = vld [vmem:[%s1 + $0x10] sm:$0xf]
        %v1557 = vld [vmem:[%s1 + $0x14] sm:$0xf]
        %v1558 = vld [vmem:[%s1 + $0x18] sm:$0xf]
        %v1559 = vld [vmem:[%s1 + $0x1c] sm:$0xf]
        %v1568 = vunpack.c.l.b16 %v1552
        %v1569 = vunpack.c.l.b16 %v1553
        %v1570 = vunpack.c.l.b16 %v1554
        %v1571 = vunpack.c.l.b16 %v1555
        %v1572 = vunpack.c.l.b16 %v1556
        %v1573 = vunpack.c.l.b16 %v1557
        %v1574 = vunpack.c.l.b16 %v1558
        %v1575 = vunpack.c.l.b16 %v1559
        %v1576 = vpack.c.b16 %v1569, %v1568
        %v1577 = vpack.c.b16 %v1571, %v1570
        %v1578 = vpack.c.b16 %v1573, %v1572
        %v1579 = vpack.c.b16 %v1575, %v1574
        %vm1580 = vcmask 293888
        %v1582 = vsel %vm1580, %v1576, 0
        %v1585 = vsel %vm1580, %v1577, 0
        %v1588 = vsel %vm1580, %v1578, 0
        %v1591 = vsel %vm1580, %v1579, 0
        %v1593 = vsel %vm1580, %v1521, 0
        %v1595 = vsel %vm1580, %v1523, 0
        %v1597 = vsel %vm1580, %v1525, 0
        %v1599 = vsel %vm1580, %v1527, 0
        %v1601 = vsel %vm1580, %v1529, 0
        %v1603 = vsel %vm1580, %v1531, 0
        %v1605 = vsel %vm1580, %v1533, 0
        %v1607 = vsel %vm1580, %v1535, 0
        %v1609 = vsel %vm1580, %v1537, 0
        %v1611 = vsel %vm1580, %v1539, 0
        %v1613 = vsel %vm1580, %v1541, 0
        %v1615 = vsel %vm1580, %v1543, 0
        %v1617 = vsel %vm1580, %v1545, 0
        %v1619 = vsel %vm1580, %v1547, 0
        %v1621 = vsel %vm1580, %v1549, 0
        %v1623 = vsel %vm1580, %v1551, 0
        %1625 = vmatprep.subr.bf16.mxu0 0
        %1626 = vmatpush1.bf16.xpose.msra.mxu0 %v1593
        %1627 = vmatprep.subr.bf16.mxu0 0
        %1628 = vmatpush1.bf16.xpose.msra.mxu0 %v1595
        %1629 = vmatprep.subr.bf16.mxu0 0
        %1630 = vmatpush1.bf16.xpose.msra.mxu0 %v1597
        %1631 = vmatprep.subr.bf16.mxu0 0
        %1632 = vmatpush1.bf16.xpose.msra.mxu0 %v1599
        %1633 = vmatprep.subr.bf16.mxu0 0
        %1634 = vmatpush1.bf16.xpose.msra.mxu0 %v1601
        %1635 = vmatprep.subr.bf16.mxu0 0
        %1636 = vmatpush1.bf16.xpose.msra.mxu0 %v1603
        %1637 = vmatprep.subr.bf16.mxu0 0
        %1638 = vmatpush1.bf16.xpose.msra.mxu0 %v1605
        %1639 = vmatprep.subr.bf16.mxu0 0
        %1640 = vmatpush1.bf16.xpose.msra.mxu0 %v1607
        %1641 = vmatprep.subr.bf16.mxu0 0
        %1642 = vmatpush1.bf16.xpose.msra.mxu0 %v1609
        %1643 = vmatprep.subr.bf16.mxu0 0
        %1644 = vmatpush1.bf16.xpose.msra.mxu0 %v1611
        %1645 = vmatprep.subr.bf16.mxu0 0
        %1646 = vmatpush1.bf16.xpose.msra.mxu0 %v1613
        %1647 = vmatprep.subr.bf16.mxu0 0
        %1648 = vmatpush1.bf16.xpose.msra.mxu0 %v1615
        %1649 = vmatprep.subr.bf16.mxu0 0
        %1650 = vmatpush1.bf16.xpose.msra.mxu0 %v1617
        %1651 = vmatprep.subr.bf16.mxu0 0
        %1652 = vmatpush1.bf16.xpose.msra.mxu0 %v1619
        %1653 = vmatprep.subr.bf16.mxu0 0
        %1654 = vmatpush1.bf16.xpose.msra.mxu0 %v1621
        %1655 = vmatprep.subr.bf16.mxu0 0
        %1656 = vmatpush1.bf16.xpose.msra.mxu0 %v1623
        %1657 = vmatprep.mubr.bf16.mxu0 0
        %1658 = vmatmul.mubr.bf16.gmra.mrb[0].mxu0 %v1582
        %v1659 = vpop.f32.mrb[0].mxu0
        %v1660 = vadd.f32 0.0, %v1659
        %v1661 = vpop.f32.mrb[0].mxu0
        %v1662 = vadd.f32 0.0, %v1661
        %v1663 = vpop.f32.mrb[0].mxu0
        %v1664 = vadd.f32 0.0, %v1663
        %v1665 = vpop.f32.mrb[0].mxu0
        %v1666 = vadd.f32 0.0, %v1665
        %1667 = vmatprep.mubr.bf16.mxu0 0
        %1668 = vmatmul.mubr.bf16.gmra.mrb[0].mxu0 %v1585
        %v1669 = vpop.f32.mrb[0].mxu0
        %v1670 = vadd.f32 0.0, %v1669
        %v1671 = vpop.f32.mrb[0].mxu0
        %v1672 = vadd.f32 0.0, %v1671
        %v1673 = vpop.f32.mrb[0].mxu0
        %v1674 = vadd.f32 0.0, %v1673
        %v1675 = vpop.f32.mrb[0].mxu0
        %v1676 = vadd.f32 0.0, %v1675
        %1677 = vmatprep.mubr.bf16.mxu0 0
        %1678 = vmatmul.mubr.bf16.gmra.mrb[0].mxu0 %v1588
        %v1679 = vpop.f32.mrb[0].mxu0
        %v1680 = vadd.f32 0.0, %v1679
        %v1681 = vpop.f32.mrb[0].mxu0
        %v1682 = vadd.f32 0.0, %v1681
        %v1683 = vpop.f32.mrb[0].mxu0
        %v1684 = vadd.f32 0.0, %v1683
        %v1685 = vpop.f32.mrb[0].mxu0
        %v1686 = vadd.f32 0.0, %v1685
        %1687 = vmatprep.mubr.bf16.mxu0 0
        %1688 = vmatmul.mubr.bf16.gmra.mrb[0].mxu0 %v1591
        %v1689 = vpop.f32.mrb[0].mxu0
        %v1690 = vadd.f32 0.0, %v1689
        %v1691 = vpop.f32.mrb[0].mxu0
        %v1692 = vadd.f32 0.0, %v1691
        %v1693 = vpop.f32.mrb[0].mxu0
        %v1694 = vadd.f32 0.0, %v1693
        %v1695 = vpop.f32.mrb[0].mxu0
        %v1696 = vadd.f32 0.0, %v1695
        %1697 = vdwg.mxu0
        %v1698 = vadd.f32 %v1660, %v1662
        %1699 = vadd.xlane.f32.xlu0 %v1698
        %v1700 = vpop.xlane.xlu0 %1699
        %v1701 = vadd.f32 %v1664, %v1666
        %1702 = vadd.xlane.f32.xlu0 %v1701
        %v1703 = vpop.xlane.xlu0 %1702
        %v1704 = vadd.f32 %v1670, %v1672
        %1705 = vadd.xlane.f32.xlu0 %v1704
        %v1706 = vpop.xlane.xlu0 %1705
        %v1707 = vadd.f32 %v1674, %v1676
        %1708 = vadd.xlane.f32.xlu0 %v1707
        %v1709 = vpop.xlane.xlu0 %1708
        %v1710 = vadd.f32 %v1680, %v1682
        %1711 = vadd.xlane.f32.xlu0 %v1710
        %v1712 = vpop.xlane.xlu0 %1711
        %v1713 = vadd.f32 %v1684, %v1686
        %1714 = vadd.xlane.f32.xlu0 %v1713
        %v1715 = vpop.xlane.xlu0 %1714
        %v1716 = vadd.f32 %v1690, %v1692
        %1717 = vadd.xlane.f32.xlu0 %v1716
        %v1718 = vpop.xlane.xlu0 %1717
        %v1719 = vadd.f32 %v1694, %v1696
        %1720 = vadd.xlane.f32.xlu0 %v1719
        %v1721 = vpop.xlane.xlu0 %1720
        %v1722 = vmul.f32 %v1660, %v1660
        %v1723 = vmul.f32 %v1662, %v1662
        %v1724 = vmul.f32 %v1664, %v1664
        %v1725 = vmul.f32 %v1666, %v1666
        %v1726 = vmul.f32 %v1670, %v1670
        %v1727 = vmul.f32 %v1672, %v1672
        %v1728 = vmul.f32 %v1674, %v1674
        %v1729 = vmul.f32 %v1676, %v1676
        %v1730 = vmul.f32 %v1680, %v1680
        %v1731 = vmul.f32 %v1682, %v1682
        %v1732 = vmul.f32 %v1684, %v1684
        %v1733 = vmul.f32 %v1686, %v1686
        %v1734 = vmul.f32 %v1690, %v1690
        %v1735 = vmul.f32 %v1692, %v1692
        %v1736 = vmul.f32 %v1694, %v1694
        %v1737 = vmul.f32 %v1696, %v1696
        %v1738 = vadd.f32 %v1722, %v1723
        %1739 = vadd.xlane.f32.xlu0 %v1738
        %v1740 = vpop.xlane.xlu0 %1739
        %v1741 = vadd.f32 %v1724, %v1725
        %1742 = vadd.xlane.f32.xlu0 %v1741
        %v1743 = vpop.xlane.xlu0 %1742
        %v1744 = vadd.f32 %v1726, %v1727
        %1745 = vadd.xlane.f32.xlu0 %v1744
        %v1746 = vpop.xlane.xlu0 %1745
        %v1747 = vadd.f32 %v1728, %v1729
        %1748 = vadd.xlane.f32.xlu0 %v1747
        %v1749 = vpop.xlane.xlu0 %1748
        %v1750 = vadd.f32 %v1730, %v1731
        %1751 = vadd.xlane.f32.xlu0 %v1750
        %v1752 = vpop.xlane.xlu0 %1751
        %v1753 = vadd.f32 %v1732, %v1733
        %1754 = vadd.xlane.f32.xlu0 %v1753
        %v1755 = vpop.xlane.xlu0 %1754
        %v1756 = vadd.f32 %v1734, %v1735
        %1757 = vadd.xlane.f32.xlu0 %v1756
        %v1758 = vpop.xlane.xlu0 %1757
        %v1759 = vadd.f32 %v1736, %v1737
        %1760 = vadd.xlane.f32.xlu0 %v1759
        %v1761 = vpop.xlane.xlu0 %1760
        %v1770 = vlaneseq
        %v1771 = vand.u32 %v1770, 127
        %v1772 = vlaneseq
        %v1773 = vshrl.u32 %v1772, 7
        %v1774 = vsub.s32 %v1771, %v1773
        %v1775 = vrot.slane %v1700, %v1774
        %v1776 = vadd.s32 %v1771, 4294967288
        %v1777 = vlaneseq
        %v1778 = vshrl.u32 %v1777, 7
        %v1779 = vsub.s32 %v1776, %v1778
        %v1780 = vrot.slane %v1703, %v1779
        %vm1781 = vcmask 130112
        %v1782 = vsel %vm1781, %v1780, %v1775
        %v1783 = vadd.s32 %v1771, 4294967280
        %v1784 = vlaneseq
        %v1785 = vshrl.u32 %v1784, 7
        %v1786 = vsub.s32 %v1783, %v1785
        %v1787 = vrot.slane %v1706, %v1786
        %vm1788 = vcmask 195712
        %v1789 = vsel %vm1788, %v1787, %v1782
        %v1790 = vadd.s32 %v1771, 4294967272
        %v1791 = vlaneseq
        %v1792 = vshrl.u32 %v1791, 7
        %v1793 = vsub.s32 %v1790, %v1792
        %v1794 = vrot.slane %v1709, %v1793
        %vm1795 = vcmask 261312
        %v1796 = vsel %vm1795, %v1794, %v1789
        %v1797 = vadd.s32 %v1771, 4294967264
        %v1798 = vlaneseq
        %v1799 = vshrl.u32 %v1798, 7
        %v1800 = vsub.s32 %v1797, %v1799
        %v1801 = vrot.slane %v1712, %v1800
        %vm1802 = vcmask 326912
        %v1803 = vsel %vm1802, %v1801, %v1796
        %v1804 = vadd.s32 %v1771, 4294967256
        %v1805 = vlaneseq
        %v1806 = vshrl.u32 %v1805, 7
        %v1807 = vsub.s32 %v1804, %v1806
        %v1808 = vrot.slane %v1715, %v1807
        %vm1809 = vcmask 392512
        %v1810 = vsel %vm1809, %v1808, %v1803
        %v1811 = vadd.s32 %v1771, 4294967248
        %v1812 = vlaneseq
        %v1813 = vshrl.u32 %v1812, 7
        %v1814 = vsub.s32 %v1811, %v1813
        %v1815 = vrot.slane %v1718, %v1814
        %vm1816 = vcmask 458112
        %v1817 = vsel %vm1816, %v1815, %v1810
        %v1818 = vadd.s32 %v1771, 4294967240
        %v1819 = vlaneseq
        %v1820 = vshrl.u32 %v1819, 7
        %v1821 = vsub.s32 %v1818, %v1820
        %v1822 = vrot.slane %v1721, %v1821
        %vm1823 = vcmask 523712
        %v1824 = vsel %vm1823, %v1822, %v1817
        %v1834 = vlaneseq
        %v1835 = vshrl.u32 %v1834, 7
        %v1836 = vsub.s32 %v1771, %v1835
        %v1837 = vrot.slane %v1740, %v1836
        %v1838 = vlaneseq
        %v1839 = vshrl.u32 %v1838, 7
        %v1840 = vsub.s32 %v1776, %v1839
        %v1841 = vrot.slane %v1743, %v1840
        %v1842 = vsel %vm1781, %v1841, %v1837
        %v1843 = vlaneseq
        %v1844 = vshrl.u32 %v1843, 7
        %v1845 = vsub.s32 %v1783, %v1844
        %v1846 = vrot.slane %v1746, %v1845
        %v1847 = vsel %vm1788, %v1846, %v1842
        %v1848 = vlaneseq
        %v1849 = vshrl.u32 %v1848, 7
        %v1850 = vsub.s32 %v1790, %v1849
        %v1851 = vrot.slane %v1749, %v1850
        %v1852 = vsel %vm1795, %v1851, %v1847
        %v1853 = vlaneseq
        %v1854 = vshrl.u32 %v1853, 7
        %v1855 = vsub.s32 %v1797, %v1854
        %v1856 = vrot.slane %v1752, %v1855
        %v1857 = vsel %vm1802, %v1856, %v1852
        %v1858 = vlaneseq
        %v1859 = vshrl.u32 %v1858, 7
        %v1860 = vsub.s32 %v1804, %v1859
        %v1861 = vrot.slane %v1755, %v1860
        %v1862 = vsel %vm1809, %v1861, %v1857
        %v1863 = vlaneseq
        %v1864 = vshrl.u32 %v1863, 7
        %v1865 = vsub.s32 %v1811, %v1864
        %v1866 = vrot.slane %v1758, %v1865
        %v1867 = vsel %vm1816, %v1866, %v1862
        %v1868 = vlaneseq
        %v1869 = vshrl.u32 %v1868, 7
        %v1870 = vsub.s32 %v1818, %v1869
        %v1871 = vrot.slane %v1761, %v1870
        %v1872 = vsel %vm1823, %v1871, %v1867
        %vm1874 = vcmask 1040384
        %v1875 = vsel %vm1874, %v1824, %v1872
        %vm1876 = vcmask 517120
        %1877 = vst.msk [vmem:[%s174] sm:$0x3] %vm1876, %v1875
        %v1878 = vpack.c.bf16 %v1664, %v1660
        %v1879 = vpack.c.bf16 %v1666, %v1662
        %v1880 = vpack.c.bf16 %v1674, %v1670
        %v1881 = vpack.c.bf16 %v1676, %v1672
        %v1882 = vpack.c.bf16 %v1684, %v1680
        %v1883 = vpack.c.bf16 %v1686, %v1682
        %v1884 = vpack.c.bf16 %v1694, %v1690
        %v1885 = vpack.c.bf16 %v1696, %v1692
        %v1894 = vunpack.c.l.b16 %v1878
        %v1895 = vunpack.c.l.b16 %v1879
        %v1896 = vunpack.c.h.b16 %v1878
        %v1897 = vunpack.c.h.b16 %v1879
        %v1898 = vunpack.c.l.b16 %v1880
        %v1899 = vunpack.c.l.b16 %v1881
        %v1900 = vunpack.c.h.b16 %v1880
        %v1901 = vunpack.c.h.b16 %v1881
        %v1902 = vunpack.c.l.b16 %v1882
        %v1903 = vunpack.c.l.b16 %v1883
        %v1904 = vunpack.c.h.b16 %v1882
        %v1905 = vunpack.c.h.b16 %v1883
        %v1906 = vunpack.c.l.b16 %v1884
        %v1907 = vunpack.c.l.b16 %v1885
        %v1908 = vunpack.c.h.b16 %v1884
        %v1909 = vunpack.c.h.b16 %v1885
        %v1910 = vpack.c.b16 %v1895, %v1894
        %v1911 = vpack.c.b16 %v1897, %v1896
        %v1912 = vpack.c.b16 %v1899, %v1898
        %v1913 = vpack.c.b16 %v1901, %v1900
        %v1914 = vpack.c.b16 %v1903, %v1902
        %v1915 = vpack.c.b16 %v1905, %v1904
        %v1916 = vpack.c.b16 %v1907, %v1906
        %v1917 = vpack.c.b16 %v1909, %v1908
        %1926 = vst [vmem:[%s167] sm:$0xff] %v1910
        %1927 = vst [vmem:[%s167 + $0x8] sm:$0xff] %v1911
        %1928 = vst [vmem:[%s167 + $0x10] sm:$0xff] %v1912
        %1929 = vst [vmem:[%s167 + $0x18] sm:$0xff] %v1913
        %1930 = vst [vmem:[%s167 + $0x20] sm:$0xff] %v1914
        %1931 = vst [vmem:[%s167 + $0x28] sm:$0xff] %v1915
        %1932 = vst [vmem:[%s167 + $0x30] sm:$0xff] %v1916
        %1933 = vst [vmem:[%s167 + $0x38] sm:$0xff] %v1917
        %s1934 = sand.u32 %s76, 1
        %s1935 = scalar_lea.sflag [#allocation3], %s1934
        %s1936 = sand.u32 %s76, 1
        %s1937 = smul.addr %s1936, 64
        %s1938 = scalar_lea.vmem [#allocation2], %s1937
        %s1939 = sand.u32 %s102, 1
        %s1940 = scalar_lea.sflag [#allocation5], %s1939
        %s1941 = sand.u32 %s102, 1
        %s1942 = smul.addr %s1941, 2
        %s1943 = scalar_lea.vmem [#allocation4], %s1942
        // Predicated region
        $region29: #{tpu_custom_call.1} parent=27 // pred_check
          %p1944 = pneg %p86
        $region30: #{tpu_custom_call.1} parent=27 // pred_check_branch
          %1946 = sbr.rel (%p1944) target = $region32
        $region31: #{tpu_custom_call.1} parent=27 // pred_region
          %s1947 = smul.u32 2, %s21
          %s1949 = ssub.s32 1024, 1024
          %1950 = vsyncadd %s1935, %s1949
          %s1951 = smul.addr %s1947, 64
          %s1952 = scalar_lea.hbm %s2, %s1951
          %s1953 = sshll.u32 %s1938, 4
          %s1954 = int_to_ptr.vmem [resolvable:$true] %s1953
          %1959 = dma.vmem_to_hbm [thread:$0]  %s1954, 1024, %s1952, %s1935, 128, 256, 8
        $region32: #{tpu_custom_call.1} parent=27 // pred_fallthru
          _
        // Predicated region
        $region33: #{tpu_custom_call.1} parent=27 // pred_check
          %p1960 = pneg %p112
        $region34: #{tpu_custom_call.1} parent=27 // pred_check_branch
          %1962 = sbr.rel (%p1960) target = $region36
        $region35: #{tpu_custom_call.1} parent=27 // pred_region
          %s1964 = ssub.s32 32, 32
          %1965 = vsyncadd %s1940, %s1964
          %s1966 = smul.addr %s21, 32
          %s1967 = scalar_lea.hbm %s3, %s1966
          %s1969 = sshll.u32 %s1943, 4
          %s1970 = int_to_ptr.vmem [resolvable:$true] %s1969
          %1972 = dma.vmem_to_hbm [thread:$0]  %s1970, 32, %s1967, %s1940
        $region36: #{tpu_custom_call.1} parent=27 // pred_fallthru
          _
      $region28: #{tpu_custom_call.1} parent=5 // pred_fallthru
        _
      %p1973 = scmp.le.s32.totalorder 2, %s16
      // Predicated region
      $region37: #{tpu_custom_call.1} parent=5 // pred_check
        %p1974 = pneg %p1973
      $region38: #{tpu_custom_call.1} parent=5 // pred_check_branch
        %1976 = sbr.rel (%p1974) target = $region40
      $region39: #{tpu_custom_call.1} parent=5 // pred_region
        %s1977 = ssub.s32 %s16, 2
        // Predicated region
        $region41: #{tpu_custom_call.1} parent=39 // pred_check
          %p1978 = pneg %p92
        $region42: #{tpu_custom_call.1} parent=39 // pred_check_branch
          %1980 = sbr.rel (%p1978) target = $region44
        $region43: #{tpu_custom_call.1} parent=39 // pred_region
          %s1981 = sand.u32 %s77, 1
          %s1982 = scalar_lea.sflag [#allocation3], %s1981
          %s1983 = sand.u32 %s77, 1
          %s1984 = smul.addr %s1983, 64
          %s1985 = scalar_lea.vmem [#allocation2], %s1984
          %1986 = dma.done %s1982, 1024
        $region44: #{tpu_custom_call.1} parent=39 // pred_fallthru
          _
        // Predicated region
        $region45: #{tpu_custom_call.1} parent=39 // pred_check
          %p1987 = pneg %p118
        $region46: #{tpu_custom_call.1} parent=39 // pred_check_branch
          %1989 = sbr.rel (%p1987) target = $region48
        $region47: #{tpu_custom_call.1} parent=39 // pred_region
          %s1990 = sand.u32 %s103, 1
          %s1991 = scalar_lea.sflag [#allocation5], %s1990
          %s1992 = sand.u32 %s103, 1
          %s1993 = smul.addr %s1992, 2
          %s1994 = scalar_lea.vmem [#allocation4], %s1993
          %1995 = dma.done %s1991, 32
        $region48: #{tpu_custom_call.1} parent=39 // pred_fallthru
          _
      $region40: #{tpu_custom_call.1} parent=5 // pred_fallthru
        _
    $region6: #{tpu_custom_call.1} parent=1 // loop_footer
      %s20 = sadd.s32 1, %s16
    $region7: #{tpu_custom_call.1} parent=1 // loop_footer_branch
      %15 = sbr.rel target = $region3
    $region8: #{tpu_custom_call.1} parent=1 // loop_exit
      _
    %1996 = vsyncpa [#allocation3], 1
    %s1997 = scalar_lea.sflag [#allocation3], 1
    %1998 = vsyncpa %s1997, 1
    %1999 = vsyncpa [#allocation5], 1
    %s2000 = scalar_lea.sflag [#allocation5], 1
    %2001 = vsyncpa %s2000, 1

</llo_original>
